<compile_context>
chip_gen: v5e
topology: v5e:2x2
jax: 0.10.0
libtpu: 0.0.40
codegen_flags: <defaults>
</compile_context>

<pallas_src>
import numpy as np
import jax
import jax.numpy as jnp
from jax.experimental import pallas as pl
from jax.experimental.pallas import tpu as pltpu

LANE = 128
SUBLANE = 8


# ----------------------------------------------------------------------------
# Host-side parameter setup (pure glue, deterministic)
# ----------------------------------------------------------------------------

def round_up(n, m):
    return ((n + m - 1) // m) * m


def pad_to(a, shape):
    out = np.zeros(shape, dtype=a.dtype)
    out[tuple(slice(0, s) for s in a.shape)] = a
    return out


def conv_transpose_out_size(hin, k, stride, pad):
    return (hin - 1) * stride - 2 * pad + k


def dense_matrix_from_convT(w, hin, win, stride, pad):
    """Dense (Cin*Hin*Win, Cout*Hout*Wout) matrix equivalent to
    nn.ConvTranspose2d with weight w of shape (Cin, Cout, kH, kW)."""
    cin, cout, kh_sz, kw_sz = w.shape
    hout = conv_transpose_out_size(hin, kh_sz, stride, pad)
    wout = conv_transpose_out_size(win, kw_sz, stride, pad)
    m = np.zeros((cin * hin * win, cout * hout * wout), dtype=np.float32)
    for ci in range(cin):
        for ih in range(hin):
            for iw in range(win):
                row = (ci * hin + ih) * win + iw
                for co in range(cout):
                    for kh in range(kh_sz):
                        for kw in range(kw_sz):
                            oh = ih * stride - pad + kh
                            ow = iw * stride - pad + kw
                            if 0 <= oh < hout and 0 <= ow < wout:
                                col = (co * hout + oh) * wout + ow
                                m[row, col] = w[ci, co, kh, kw]
    return m, hout, wout


def conv_transpose2d_ref(x, w, b, stride, pad):
    """Numpy reference for nn.ConvTranspose2d forward (NCHW)."""
    B, cin, hin, win = x.shape
    _, cout, kh_sz, kw_sz = w.shape
    hout = conv_transpose_out_size(hin, kh_sz, stride, pad)
    wout = conv_transpose_out_size(win, kw_sz, stride, pad)
    out = np.zeros((B, cout, hout, wout), dtype=np.float64)
    for ih in range(hin):
        for iw in range(win):
            for kh in range(kh_sz):
                for kw in range(kw_sz):
                    oh = ih * stride - pad + kh
                    ow = iw * stride - pad + kw
                    if 0 <= oh < hout and 0 <= ow < wout:
                        out[:, :, oh, ow] += x[:, :, ih, iw] @ w[:, :, kh, kw]
    return out + b.reshape(1, cout, 1, 1)


# ----------------------------------------------------------------------------
# Pallas kernel: full decoder forward (5 matmuls + ReLU + sigmoid)
# ----------------------------------------------------------------------------

def decoder_kernel(x_ref,
                   m0_ref, b0_ref, m1_ref, b1_ref, m2_ref, b2_ref,
                   m3_ref, b3_ref, m4_ref, b4_ref,
                   o_ref):
    def layer(h, m_ref, b_ref):
        # bf16 operands feed the MXU natively; accumulate + bias in f32.
        return jnp.dot(h.astype(jnp.bfloat16), m_ref[...],
                       preferred_element_type=jnp.float32) + b_ref[...]

    h = x_ref[...]                               # (Bpad, 128) f32, lane-dense
    h = jnp.maximum(layer(h, m0_ref, b0_ref), 0.0)   # (Bpad, 128)
    h = jnp.maximum(layer(h, m1_ref, b1_ref), 0.0)   # (Bpad, 128)
    h = jnp.maximum(layer(h, m2_ref, b2_ref), 0.0)   # (Bpad, 256)
    h = jnp.maximum(layer(h, m3_ref, b3_ref), 0.0)   # (Bpad, 512)
    h = layer(h, m4_ref, b4_ref)                     # (Bpad, 896)
    # sigmoid: exp on EUP, reciprocal on EUP vrcp (approx) — VALU slot free.
    o_ref[...] = pl.reciprocal(1.0 + jnp.exp(-h), approx=True)


def decoder_forward_pallas(x_flat, mats_bf16, bias_rows):
    """x_flat: (B, z_dim) float32. Returns (B, 784) float32.

    Pads batch to a sublane multiple and the z dim to a lane multiple,
    runs the fully lane-dense padded kernel, and slices the result back.
    """
    B, z_dim = x_flat.shape
    Bp = max(SUBLANE, round_up(B, SUBLANE))
    Kp = mats_bf16[0].shape[0]                    # padded z width (128)
    out_pad = mats_bf16[-1].shape[1]              # padded output width (896)

    x_pad = jnp.zeros((Bp, Kp), dtype=jnp.float32)
    x_pad = x_pad.at[:B, :z_dim].set(x_flat)

    args = [x_pad]
    for m, b in zip(mats_bf16, bias_rows):
        args.append(m)
        args.append(b)
    n_in = len(args)

    out_padded = pl.pallas_call(
        decoder_kernel,
        out_shape=jax.ShapeDtypeStruct((Bp, out_pad), jnp.float32),
        in_specs=[pl.BlockSpec(memory_space=pltpu.MemorySpace.VMEM)] * n_in,
        out_specs=pl.BlockSpec(memory_space=pltpu.MemorySpace.VMEM),
    )(*args)
    return out_padded[:B, :784]


# ----------------------------------------------------------------------------
# Main
# ----------------------------------------------------------------------------

if __name__ == "__main__":
    z_dim = 8
    nef = 2
    B = 2

    key = jax.random.PRNGKey(0)
    keys = jax.random.split(key, 12)

    # Layer configs: (Cin, Cout, kernel, stride, pad)
    layer_cfgs = [
        (z_dim,   nef * 8, 1, 2, 0),   # transpose_conv0
        (nef * 8, nef * 4, 4, 2, 1),   # transpose_conv1
        (nef * 4, nef * 2, 4, 2, 0),   # transpose_conv2
        (nef * 2, nef,     4, 2, 0),   # transpose_conv3
        (nef,     1,       4, 2, 1),   # transpose_conv4
    ]

    # Deterministic weight/bias init (shapes match nn.ConvTranspose2d:
    # weight (Cin, Cout, kH, kW), bias (Cout,)).
    weights, biases_raw = [], []
    for li, (cin, cout, k, s, p) in enumerate(layer_cfgs):
        w = np.asarray(
            jax.random.uniform(keys[2 * li], (cin, cout, k, k),
                               minval=-0.3, maxval=0.3, dtype=jnp.float32))
        b = np.asarray(
            jax.random.uniform(keys[2 * li + 1], (cout,),
                               minval=-0.1, maxval=0.1, dtype=jnp.float32))
        weights.append(w)
        biases_raw.append(b)

    # Build dense matmul equivalents and lane-pad K/N to 128 multiples.
    mats_padded, bias_rows_padded = [], []
    hin, win = 1, 1
    k_prev_pad = round_up(z_dim, LANE)            # padded input width (128)
    for (cin, cout, k, s, p), w, b in zip(layer_cfgs, weights, biases_raw):
        m, hout, wout = dense_matrix_from_convT(w, hin, win, s, p)
        n_pad = round_up(m.shape[1], LANE)
        m_pad = pad_to(m, (k_prev_pad, n_pad))    # zero K-rows / N-cols
        b_row = np.repeat(b, hout * wout)[None, :].astype(np.float32)
        b_pad = pad_to(b_row, (1, n_pad))         # zero bias in padded lanes
        mats_padded.append(m_pad)
        bias_rows_padded.append(b_pad)
        hin, win = hout, wout
        k_prev_pad = n_pad
    H_out, W_out = hin, win                       # 28, 28

    # Device arrays: bf16 weights (MXU-native, half DMA), f32 biases.
    mats_bf16 = [jnp.asarray(m, dtype=jnp.bfloat16) for m in mats_padded]
    bias_rows = [jnp.asarray(b) for b in bias_rows_padded]

    # Example input (as PyTorch would see it: NCHW (B, z_dim, 1, 1)).
    x = jax.random.normal(keys[10], (B, z_dim, 1, 1), dtype=jnp.float32)
    x_flat = x.reshape(B, z_dim)

    out_flat = decoder_forward_pallas(x_flat, mats_bf16, bias_rows)
    out_flat = jax.block_until_ready(out_flat)
    out = np.asarray(out_flat).reshape(B, 1, H_out, W_out)

    # Numpy reference of the exact PyTorch forward semantics (f64 weights).
    ref = np.asarray(x, dtype=np.float64)
    for li, ((cin, cout, k, s, p), w, b) in enumerate(
            zip(layer_cfgs, weights, biases_raw)):
        ref = conv_transpose2d_ref(ref, w.astype(np.float64),
                                   b.astype(np.float64), s, p)
        if li < len(layer_cfgs) - 1:
            ref = np.maximum(ref, 0.0)
    ref = 1.0 / (1.0 + np.exp(-ref))

    assert out.shape == (B, 1, 28, 28), out.shape
    # Tolerance relaxed for bf16 matmul operands (sigmoid output in (0,1)).
    np.testing.assert_allclose(out, ref, rtol=5e-2, atol=5e-2)

    print("KERNEL_OK")
</pallas_src>

<mosaic_0001>
module attributes {stable_mosaic.version = 11 : i64} {
  func.func @decoder_kernel(%arg0: memref<8x128xf32, #tpu.memory_space<vmem>>, %arg1: memref<128x128xbf16, #tpu.memory_space<vmem>>, %arg2: memref<1x128xf32, #tpu.memory_space<vmem>>, %arg3: memref<128x128xbf16, #tpu.memory_space<vmem>>, %arg4: memref<1x128xf32, #tpu.memory_space<vmem>>, %arg5: memref<128x256xbf16, #tpu.memory_space<vmem>>, %arg6: memref<1x256xf32, #tpu.memory_space<vmem>>, %arg7: memref<256x512xbf16, #tpu.memory_space<vmem>>, %arg8: memref<1x512xf32, #tpu.memory_space<vmem>>, %arg9: memref<512x896xbf16, #tpu.memory_space<vmem>>, %arg10: memref<1x896xf32, #tpu.memory_space<vmem>>, %arg11: memref<8x896xf32, #tpu.memory_space<vmem>>) attributes {dimension_semantics = [], scalar_prefetch = 0 : i64, scratch_operands = 0 : i64, tpu.core_type = #tpu.core_type<tc>} {
    %c0 = arith.constant 0 : index
    %c0_0 = arith.constant 0 : index
    %0 = vector.load %arg0[%c0, %c0_0] : memref<8x128xf32, #tpu.memory_space<vmem>>, vector<8x128xf32>
    %1 = arith.truncf %0 : vector<8x128xf32> to vector<8x128xbf16>
    %c0_1 = arith.constant 0 : index
    %c0_2 = arith.constant 0 : index
    %2 = vector.load %arg1[%c0_1, %c0_2] : memref<128x128xbf16, #tpu.memory_space<vmem>>, vector<128x128xbf16>
    %cst = arith.constant dense<0.000000e+00> : vector<8x128xf32>
    %3 = tpu.matmul %1, %2, %cst {dimension_numbers = #tpu.dot_dimension_numbers<[1], [0], [0], [1], [0, 0, 1, 1], [], []>} : vector<8x128xbf16>, vector<128x128xbf16>, vector<8x128xf32> -> vector<8x128xf32>
    %c0_3 = arith.constant 0 : index
    %c0_4 = arith.constant 0 : index
    %4 = vector.load %arg2[%c0_3, %c0_4] : memref<1x128xf32, #tpu.memory_space<vmem>>, vector<1x128xf32>
    %5 = vector.broadcast %4 : vector<1x128xf32> to vector<8x128xf32>
    %6 = arith.addf %3, %5 : vector<8x128xf32>
    %cst_5 = arith.constant 0.000000e+00 : f32
    %7 = vector.broadcast %cst_5 : f32 to vector<8x128xf32>
    %8 = arith.maximumf %6, %7 : vector<8x128xf32>
    %9 = arith.truncf %8 : vector<8x128xf32> to vector<8x128xbf16>
    %c0_6 = arith.constant 0 : index
    %c0_7 = arith.constant 0 : index
    %10 = vector.load %arg3[%c0_6, %c0_7] : memref<128x128xbf16, #tpu.memory_space<vmem>>, vector<128x128xbf16>
    %cst_8 = arith.constant dense<0.000000e+00> : vector<8x128xf32>
    %11 = tpu.matmul %9, %10, %cst_8 {dimension_numbers = #tpu.dot_dimension_numbers<[1], [0], [0], [1], [0, 0, 1, 1], [], []>} : vector<8x128xbf16>, vector<128x128xbf16>, vector<8x128xf32> -> vector<8x128xf32>
    %c0_9 = arith.constant 0 : index
    %c0_10 = arith.constant 0 : index
    %12 = vector.load %arg4[%c0_9, %c0_10] : memref<1x128xf32, #tpu.memory_space<vmem>>, vector<1x128xf32>
    %13 = vector.broadcast %12 : vector<1x128xf32> to vector<8x128xf32>
    %14 = arith.addf %11, %13 : vector<8x128xf32>
    %cst_11 = arith.constant 0.000000e+00 : f32
    %15 = vector.broadcast %cst_11 : f32 to vector<8x128xf32>
    %16 = arith.maximumf %14, %15 : vector<8x128xf32>
    %17 = arith.truncf %16 : vector<8x128xf32> to vector<8x128xbf16>
    %c0_12 = arith.constant 0 : index
    %c0_13 = arith.constant 0 : index
    %18 = vector.load %arg5[%c0_12, %c0_13] : memref<128x256xbf16, #tpu.memory_space<vmem>>, vector<128x256xbf16>
    %cst_14 = arith.constant dense<0.000000e+00> : vector<8x256xf32>
    %19 = tpu.matmul %17, %18, %cst_14 {dimension_numbers = #tpu.dot_dimension_numbers<[1], [0], [0], [1], [0, 0, 1, 1], [], []>} : vector<8x128xbf16>, vector<128x256xbf16>, vector<8x256xf32> -> vector<8x256xf32>
    %c0_15 = arith.constant 0 : index
    %c0_16 = arith.constant 0 : index
    %20 = vector.load %arg6[%c0_15, %c0_16] : memref<1x256xf32, #tpu.memory_space<vmem>>, vector<1x256xf32>
    %21 = vector.broadcast %20 : vector<1x256xf32> to vector<8x256xf32>
    %22 = arith.addf %19, %21 : vector<8x256xf32>
    %cst_17 = arith.constant 0.000000e+00 : f32
    %23 = vector.broadcast %cst_17 : f32 to vector<8x256xf32>
    %24 = arith.maximumf %22, %23 : vector<8x256xf32>
    %25 = arith.truncf %24 : vector<8x256xf32> to vector<8x256xbf16>
    %c0_18 = arith.constant 0 : index
    %c0_19 = arith.constant 0 : index
    %26 = vector.load %arg7[%c0_18, %c0_19] : memref<256x512xbf16, #tpu.memory_space<vmem>>, vector<256x512xbf16>
    %cst_20 = arith.constant dense<0.000000e+00> : vector<8x512xf32>
    %27 = tpu.matmul %25, %26, %cst_20 {dimension_numbers = #tpu.dot_dimension_numbers<[1], [0], [0], [1], [0, 0, 1, 1], [], []>} : vector<8x256xbf16>, vector<256x512xbf16>, vector<8x512xf32> -> vector<8x512xf32>
    %c0_21 = arith.constant 0 : index
    %c0_22 = arith.constant 0 : index
    %28 = vector.load %arg8[%c0_21, %c0_22] : memref<1x512xf32, #tpu.memory_space<vmem>>, vector<1x512xf32>
    %29 = vector.broadcast %28 : vector<1x512xf32> to vector<8x512xf32>
    %30 = arith.addf %27, %29 : vector<8x512xf32>
    %cst_23 = arith.constant 0.000000e+00 : f32
    %31 = vector.broadcast %cst_23 : f32 to vector<8x512xf32>
    %32 = arith.maximumf %30, %31 : vector<8x512xf32>
    %33 = arith.truncf %32 : vector<8x512xf32> to vector<8x512xbf16>
    %c0_24 = arith.constant 0 : index
    %c0_25 = arith.constant 0 : index
    %34 = vector.load %arg9[%c0_24, %c0_25] : memref<512x896xbf16, #tpu.memory_space<vmem>>, vector<512x896xbf16>
    %cst_26 = arith.constant dense<0.000000e+00> : vector<8x896xf32>
    %35 = tpu.matmul %33, %34, %cst_26 {dimension_numbers = #tpu.dot_dimension_numbers<[1], [0], [0], [1], [0, 0, 1, 1], [], []>} : vector<8x512xbf16>, vector<512x896xbf16>, vector<8x896xf32> -> vector<8x896xf32>
    %c0_27 = arith.constant 0 : index
    %c0_28 = arith.constant 0 : index
    %36 = vector.load %arg10[%c0_27, %c0_28] : memref<1x896xf32, #tpu.memory_space<vmem>>, vector<1x896xf32>
    %37 = vector.broadcast %36 : vector<1x896xf32> to vector<8x896xf32>
    %38 = arith.addf %35, %37 : vector<8x896xf32>
    %cst_29 = arith.constant 0.000000e+00 : f32
    %39 = vector.broadcast %cst_29 : f32 to vector<8x896xf32>
    %40 = arith.subf %39, %38 : vector<8x896xf32>
    %41 = math.exp %40 : vector<8x896xf32>
    %cst_30 = arith.constant 1.000000e+00 : f32
    %42 = vector.broadcast %cst_30 : f32 to vector<8x896xf32>
    %43 = arith.addf %42, %41 : vector<8x896xf32>
    %44 = tpu.reciprocal %43 {approx = true} : vector<8x896xf32> -> vector<8x896xf32>
    %c0_31 = arith.constant 0 : index
    %c0_32 = arith.constant 0 : index
    %45 = vector.load %arg11[%c0_31, %c0_32] : memref<8x896xf32, #tpu.memory_space<vmem>>, vector<8x896xf32>
    tpu.vector_store %arg11[%c0_31, %c0_32], %44 {strides = array<i32>} : memref<8x896xf32, #tpu.memory_space<vmem>>, vector<8x896xf32>,
    return
  }
}

</mosaic_0001>

<llo_original>
// kernel: tpu_custom_call.1
$region0: #{tpu_custom_call.1}
  #allocation0 [shape = 'u32[]', space=smem, size = 0x4, offset = 0x4, fixed_abs, tag = 'smem constant byte address 0x4 - core index']
  #allocation1 [shape = 'u32[72,128]{1,0:T(1,128)}', space=vmem, size = 0x9000, scoped, tag = 'internal scratch']
  %s0 = inlined_call_operand.hbm [shape: f32[8,128], index: 0, kind: input, shape index: {}]
  %s1 = inlined_call_operand.hbm [shape: bf16[128,128], index: 1, kind: input, shape index: {}]
  %s2 = inlined_call_operand.hbm [shape: f32[1,128], index: 2, kind: input, shape index: {}]
  %s3 = inlined_call_operand.hbm [shape: bf16[128,128], index: 3, kind: input, shape index: {}]
  %s4 = inlined_call_operand.hbm [shape: f32[1,128], index: 4, kind: input, shape index: {}]
  %s5 = inlined_call_operand.hbm [shape: bf16[128,256], index: 5, kind: input, shape index: {}]
  %s6 = inlined_call_operand.vmem [shape: f32[1,256], index: 6, kind: input, shape index: {}]
  %s7 = inlined_call_operand.hbm [shape: bf16[256,512], index: 7, kind: input, shape index: {}]
  %s8 = inlined_call_operand.hbm [shape: f32[1,512], index: 8, kind: input, shape index: {}]
  %s9 = inlined_call_operand.hbm [shape: bf16[512,896], index: 9, kind: input, shape index: {}]
  %s10 = inlined_call_operand.vmem [shape: f32[1,896], index: 10, kind: input, shape index: {}]
  %s11 = inlined_call_operand.hbm [shape: f32[8,896], index: 11, kind: output, shape index: {}]
  %s12 = sld [smem:[#allocation0]]
  $region90: #{tpu_custom_call.1} parent=0
    _
  %s14 = ssub.s32 1, %s12
  %s15 = scalar_select 0, %s14, %s12
  $region1: #{tpu_custom_call.1} parent=0
    #allocation2 [shape = 'u8[4096]{0}', space=vmem, size = 0x1000, scoped, tag = 'input window, operand 0, single buffered']
    #allocation3 [shape = 's32[1]{0}', space=sflag, size = 0x4, scoped, tag = 'scoped memory for tpu_custom_call.1']
    #allocation4 [shape = 's32[1]{0}', space=sflag, size = 0x4, scoped, tag = 'scoped memory for tpu_custom_call.1']
    #allocation5 [shape = 'u8[32768]{0}', space=vmem, size = 0x8000, scoped, tag = 'input window, operand 1, single buffered']
    #allocation6 [shape = 's32[1]{0}', space=sflag, size = 0x4, scoped, tag = 'scoped memory for tpu_custom_call.1']
    #allocation7 [shape = 'u8[512]{0}', space=vmem, size = 0x400, scoped, tag = 'input window, operand 2, single buffered']
    #allocation8 [shape = 'u8[32768]{0}', space=vmem, size = 0x8000, scoped, tag = 'input window, operand 3, single buffered']
    #allocation9 [shape = 's32[1]{0}', space=sflag, size = 0x4, scoped, tag = 'scoped memory for tpu_custom_call.1']
    #allocation10 [shape = 'u8[512]{0}', space=vmem, size = 0x400, scoped, tag = 'input window, operand 4, single buffered']
    #allocation11 [shape = 'u8[65536]{0}', space=vmem, size = 0x10000, scoped, tag = 'input window, operand 5, single buffered']
    #allocation12 [shape = 's32[1]{0}', space=sflag, size = 0x4, scoped, tag = 'scoped memory for tpu_custom_call.1']
    #allocation13 [shape = 'u8[262144]{0}', space=vmem, size = 0x40000, scoped, tag = 'input window, operand 7, single buffered']
    #allocation14 [shape = 'u8[2048]{0}', space=vmem, size = 0x800, scoped, tag = 'input window, operand 8, single buffered']
    #allocation15 [shape = 's32[1]{0}', space=sflag, size = 0x4, scoped, tag = 'scoped memory for tpu_custom_call.1']
    #allocation16 [shape = 'u8[917504]{0}', space=vmem, size = 0xe0000, scoped, tag = 'input window, operand 9, single buffered']
    #allocation17 [shape = 'u8[28672]{0}', space=vmem, size = 0x7000, scoped, tag = 'output window, operand 0, single buffered']
    %16 = vsyncpa [#allocation3], 0
    %17 = vsyncpa [#allocation6], 0
    %18 = vsyncpa [#allocation9], 0
    %19 = vsyncpa [#allocation12], 0
    %20 = vsyncpa [#allocation15], 0
    %21 = vsyncpa [#allocation4], 0
    // Predicated region
    $region2: #{tpu_custom_call.1} parent=1 // pred_check
      _
    $region3: #{tpu_custom_call.1} parent=1 // pred_check_branch
      %23 = sbr.rel (0) target = $region5
    $region4: #{tpu_custom_call.1} parent=1 // pred_region
      %25 = vsyncadd [#allocation3], 0
      %s27 = sshll.u32 %s0, 4
      %s28 = int_to_ptr.hbm [resolvable:$true] %s27
      %s29 = sshll.u32 [#allocation2], 4
      %s30 = int_to_ptr.vmem [resolvable:$true] %s29
      %32 = dma.hbm_to_vmem [thread:$0]  %s28, 128, %s30, [#allocation3]
    $region5: #{tpu_custom_call.1} parent=1 // pred_fallthru
      _
    // Predicated region
    $region6: #{tpu_custom_call.1} parent=1 // pred_check
      _
    $region7: #{tpu_custom_call.1} parent=1 // pred_check_branch
      %34 = sbr.rel (0) target = $region9
    $region8: #{tpu_custom_call.1} parent=1 // pred_region
      %36 = vsyncadd [#allocation6], 0
      %s37 = sshll.u32 %s1, 4
      %s38 = int_to_ptr.hbm [resolvable:$true] %s37
      %s39 = sshll.u32 [#allocation5], 4
      %s40 = int_to_ptr.vmem [resolvable:$true] %s39
      %45 = dma.hbm_to_vmem [thread:$0]  %s38, 1024, %s40, [#allocation6], 64, 64, 4
    $region9: #{tpu_custom_call.1} parent=1 // pred_fallthru
      _
    // Predicated region
    $region10: #{tpu_custom_call.1} parent=1 // pred_check
      _
    $region11: #{tpu_custom_call.1} parent=1 // pred_check_branch
      %47 = sbr.rel (0) target = $region13
    $region12: #{tpu_custom_call.1} parent=1 // pred_region
      %49 = vsyncadd [#allocation6], 0
      %s51 = sshll.u32 %s2, 4
      %s52 = int_to_ptr.hbm [resolvable:$true] %s51
      %s53 = sshll.u32 [#allocation7], 4
      %s54 = int_to_ptr.vmem [resolvable:$true] %s53
      %56 = dma.hbm_to_vmem [thread:$0]  %s52, 16, %s54, [#allocation6]
    $region13: #{tpu_custom_call.1} parent=1 // pred_fallthru
      _
    // Predicated region
    $region14: #{tpu_custom_call.1} parent=1 // pred_check
      _
    $region15: #{tpu_custom_call.1} parent=1 // pred_check_branch
      %58 = sbr.rel (0) target = $region17
    $region16: #{tpu_custom_call.1} parent=1 // pred_region
      %60 = vsyncadd [#allocation9], 0
      %s61 = sshll.u32 %s3, 4
      %s62 = int_to_ptr.hbm [resolvable:$true] %s61
      %s63 = sshll.u32 [#allocation8], 4
      %s64 = int_to_ptr.vmem [resolvable:$true] %s63
      %69 = dma.hbm_to_vmem [thread:$0]  %s62, 1024, %s64, [#allocation9], 64, 64, 4
    $region17: #{tpu_custom_call.1} parent=1 // pred_fallthru
      _
    // Predicated region
    $region18: #{tpu_custom_call.1} parent=1 // pred_check
      _
    $region19: #{tpu_custom_call.1} parent=1 // pred_check_branch
      %71 = sbr.rel (0) target = $region21
    $region20: #{tpu_custom_call.1} parent=1 // pred_region
      %73 = vsyncadd [#allocation9], 0
      %s75 = sshll.u32 %s4, 4
      %s76 = int_to_ptr.hbm [resolvable:$true] %s75
      %s77 = sshll.u32 [#allocation10], 4
      %s78 = int_to_ptr.vmem [resolvable:$true] %s77
      %80 = dma.hbm_to_vmem [thread:$0]  %s76, 16, %s78, [#allocation9]
    $region21: #{tpu_custom_call.1} parent=1 // pred_fallthru
      _
    // Predicated region
    $region22: #{tpu_custom_call.1} parent=1 // pred_check
      _
    $region23: #{tpu_custom_call.1} parent=1 // pred_check_branch
      %82 = sbr.rel (0) target = $region25
    $region24: #{tpu_custom_call.1} parent=1 // pred_region
      %84 = vsyncadd [#allocation12], 0
      %s85 = sshll.u32 %s5, 4
      %s86 = int_to_ptr.hbm [resolvable:$true] %s85
      %s87 = sshll.u32 [#allocation11], 4
      %s88 = int_to_ptr.vmem [resolvable:$true] %s87
      %93 = dma.hbm_to_vmem [thread:$0]  %s86, 2048, %s88, [#allocation12], 128, 128, 8
    $region25: #{tpu_custom_call.1} parent=1 // pred_fallthru
      _
    // Predicated region
    $region26: #{tpu_custom_call.1} parent=1 // pred_check
      _
    $region27: #{tpu_custom_call.1} parent=1 // pred_check_branch
      %95 = sbr.rel (0) target = $region29
    $region28: #{tpu_custom_call.1} parent=1 // pred_region
      _
    $region29: #{tpu_custom_call.1} parent=1 // pred_fallthru
      _
    // Predicated region
    $region30: #{tpu_custom_call.1} parent=1 // pred_check
      _
    $region31: #{tpu_custom_call.1} parent=1 // pred_check_branch
      %97 = sbr.rel (0) target = $region33
    $region32: #{tpu_custom_call.1} parent=1 // pred_region
      %99 = vsyncadd [#allocation12], 0
      %s100 = sshll.u32 %s7, 4
      %s101 = int_to_ptr.hbm [resolvable:$true] %s100
      %s102 = sshll.u32 [#allocation13], 4
      %s103 = int_to_ptr.vmem [resolvable:$true] %s102
      %108 = dma.hbm_to_vmem [thread:$0]  %s101, 8192, %s103, [#allocation12], 256, 256, 16
    $region33: #{tpu_custom_call.1} parent=1 // pred_fallthru
      _
    // Predicated region
    $region34: #{tpu_custom_call.1} parent=1 // pred_check
      _
    $region35: #{tpu_custom_call.1} parent=1 // pred_check_branch
      %110 = sbr.rel (0) target = $region37
    $region36: #{tpu_custom_call.1} parent=1 // pred_region
      %112 = vsyncadd [#allocation15], 0
      %s114 = sshll.u32 %s8, 4
      %s115 = int_to_ptr.hbm [resolvable:$true] %s114
      %s116 = sshll.u32 [#allocation14], 4
      %s117 = int_to_ptr.vmem [resolvable:$true] %s116
      %119 = dma.hbm_to_vmem [thread:$0]  %s115, 64, %s117, [#allocation15]
    $region37: #{tpu_custom_call.1} parent=1 // pred_fallthru
      _
    // Predicated region
    $region38: #{tpu_custom_call.1} parent=1 // pred_check
      _
    $region39: #{tpu_custom_call.1} parent=1 // pred_check_branch
      %121 = sbr.rel (0) target = $region41
    $region40: #{tpu_custom_call.1} parent=1 // pred_region
      %123 = vsyncadd [#allocation15], 0
      %s124 = sshll.u32 %s9, 4
      %s125 = int_to_ptr.hbm [resolvable:$true] %s124
      %s126 = sshll.u32 [#allocation16], 4
      %s127 = int_to_ptr.vmem [resolvable:$true] %s126
      %132 = dma.hbm_to_vmem [thread:$0]  %s125, 28672, %s127, [#allocation15], 448, 448, 28
    $region41: #{tpu_custom_call.1} parent=1 // pred_fallthru
      _
    // Predicated region
    $region42: #{tpu_custom_call.1} parent=1 // pred_check
      _
    $region43: #{tpu_custom_call.1} parent=1 // pred_check_branch
      %134 = sbr.rel (0) target = $region45
    $region44: #{tpu_custom_call.1} parent=1 // pred_region
      _
    $region45: #{tpu_custom_call.1} parent=1 // pred_fallthru
      _
    // Predicated region
    $region46: #{tpu_custom_call.1} parent=1 // pred_check
      _
    $region47: #{tpu_custom_call.1} parent=1 // pred_check_branch
      %136 = sbr.rel (0) target = $region49
    $region48: #{tpu_custom_call.1} parent=1 // pred_region
      %138 = dma.done [#allocation3], 128
    $region49: #{tpu_custom_call.1} parent=1 // pred_fallthru
      _
    // Predicated region
    $region50: #{tpu_custom_call.1} parent=1 // pred_check
      _
    $region51: #{tpu_custom_call.1} parent=1 // pred_check_branch
      %140 = sbr.rel (0) target = $region53
    $region52: #{tpu_custom_call.1} parent=1 // pred_region
      %142 = dma.done [#allocation6], 1024
    $region53: #{tpu_custom_call.1} parent=1 // pred_fallthru
      _
    // Predicated region
    $region54: #{tpu_custom_call.1} parent=1 // pred_check
      _
    $region55: #{tpu_custom_call.1} parent=1 // pred_check_branch
      %144 = sbr.rel (0) target = $region57
    $region56: #{tpu_custom_call.1} parent=1 // pred_region
      %146 = dma.done [#allocation6], 16
    $region57: #{tpu_custom_call.1} parent=1 // pred_fallthru
      _
    // Predicated region
    $region58: #{tpu_custom_call.1} parent=1 // pred_check
      _
    $region59: #{tpu_custom_call.1} parent=1 // pred_check_branch
      %148 = sbr.rel (0) target = $region61
    $region60: #{tpu_custom_call.1} parent=1 // pred_region
      %150 = dma.done [#allocation9], 1024
    $region61: #{tpu_custom_call.1} parent=1 // pred_fallthru
      _
    // Predicated region
    $region62: #{tpu_custom_call.1} parent=1 // pred_check
      _
    $region63: #{tpu_custom_call.1} parent=1 // pred_check_branch
      %152 = sbr.rel (0) target = $region65
    $region64: #{tpu_custom_call.1} parent=1 // pred_region
      %154 = dma.done [#allocation9], 16
    $region65: #{tpu_custom_call.1} parent=1 // pred_fallthru
      _
    // Predicated region
    $region66: #{tpu_custom_call.1} parent=1 // pred_check
      _
    $region67: #{tpu_custom_call.1} parent=1 // pred_check_branch
      %156 = sbr.rel (0) target = $region69
    $region68: #{tpu_custom_call.1} parent=1 // pred_region
      %158 = dma.done [#allocation12], 2048
    $region69: #{tpu_custom_call.1} parent=1 // pred_fallthru
      _
    // Predicated region
    $region70: #{tpu_custom_call.1} parent=1 // pred_check
      _
    $region71: #{tpu_custom_call.1} parent=1 // pred_check_branch
      %160 = sbr.rel (0) target = $region73
    $region72: #{tpu_custom_call.1} parent=1 // pred_region
      %162 = dma.done [#allocation12], 8192
    $region73: #{tpu_custom_call.1} parent=1 // pred_fallthru
      _
    // Predicated region
    $region74: #{tpu_custom_call.1} parent=1 // pred_check
      _
    $region75: #{tpu_custom_call.1} parent=1 // pred_check_branch
      %164 = sbr.rel (0) target = $region77
    $region76: #{tpu_custom_call.1} parent=1 // pred_region
      %166 = dma.done [#allocation15], 64
    $region77: #{tpu_custom_call.1} parent=1 // pred_fallthru
      _
    // Predicated region
    $region78: #{tpu_custom_call.1} parent=1 // pred_check
      _
    $region79: #{tpu_custom_call.1} parent=1 // pred_check_branch
      %168 = sbr.rel (0) target = $region81
    $region80: #{tpu_custom_call.1} parent=1 // pred_region
      %170 = dma.done [#allocation15], 28672
    $region81: #{tpu_custom_call.1} parent=1 // pred_fallthru
      _
    %v171 = vld [vmem:[#allocation2] sm:$0xff]
    %v172 = vpack.c.bf16 %v171, %v171
    %v173 = vld [vmem:[#allocation5] sm:$0xf]
    %v174 = vld [vmem:[#allocation5 + $0x4] sm:$0xf]
    %v175 = vld [vmem:[#allocation5 + $0x8] sm:$0xf]
    %v176 = vld [vmem:[#allocation5 + $0xc] sm:$0xf]
    %v177 = vld [vmem:[#allocation5 + $0x10] sm:$0xf]
    %v178 = vld [vmem:[#allocation5 + $0x14] sm:$0xf]
    %v179 = vld [vmem:[#allocation5 + $0x18] sm:$0xf]
    %v180 = vld [vmem:[#allocation5 + $0x1c] sm:$0xf]
    %v181 = vld [vmem:[#allocation5 + $0x20] sm:$0xf]
    %v182 = vld [vmem:[#allocation5 + $0x24] sm:$0xf]
    %v183 = vld [vmem:[#allocation5 + $0x28] sm:$0xf]
    %v184 = vld [vmem:[#allocation5 + $0x2c] sm:$0xf]
    %v185 = vld [vmem:[#allocation5 + $0x30] sm:$0xf]
    %v186 = vld [vmem:[#allocation5 + $0x34] sm:$0xf]
    %v187 = vld [vmem:[#allocation5 + $0x38] sm:$0xf]
    %v188 = vld [vmem:[#allocation5 + $0x3c] sm:$0xf]
    %v189 = vld [vmem:[#allocation7] sm:$0x1]
    %v191 = vperm.slane %v189, 0
    %v209 = vunpack.c.l.b16 %v173
    %v210 = vunpack.c.l.b16 %v174
    %v211 = vunpack.c.l.b16 %v175
    %v212 = vunpack.c.l.b16 %v176
    %v213 = vunpack.c.l.b16 %v177
    %v214 = vunpack.c.l.b16 %v178
    %v215 = vunpack.c.l.b16 %v179
    %v216 = vunpack.c.l.b16 %v180
    %v217 = vunpack.c.l.b16 %v181
    %v218 = vunpack.c.l.b16 %v182
    %v219 = vunpack.c.l.b16 %v183
    %v220 = vunpack.c.l.b16 %v184
    %v221 = vunpack.c.l.b16 %v185
    %v222 = vunpack.c.l.b16 %v186
    %v223 = vunpack.c.l.b16 %v187
    %v224 = vunpack.c.l.b16 %v188
    %v225 = vpack.c.b16 %v210, %v209
    %v226 = vpack.c.b16 %v212, %v211
    %v227 = vpack.c.b16 %v214, %v213
    %v228 = vpack.c.b16 %v216, %v215
    %v229 = vpack.c.b16 %v218, %v217
    %v230 = vpack.c.b16 %v220, %v219
    %v231 = vpack.c.b16 %v222, %v221
    %v232 = vpack.c.b16 %v224, %v223
    %241 = vmatpush.bf16.msra.mxu0 %v232
    %242 = vmatpush.bf16.msra.mxu0 %v231
    %243 = vmatpush.bf16.msra.mxu0 %v230
    %244 = vmatpush.bf16.msra.mxu0 %v229
    %245 = vmatpush.bf16.msra.mxu0 %v228
    %246 = vmatpush.bf16.msra.mxu0 %v227
    %247 = vmatpush.bf16.msra.mxu0 %v226
    %248 = vmatpush.bf16.msra.mxu0 %v225
    %249 = vmatmul.bf16.gmra.mxu0 %v172
    %v250 = vpop.f32.mrf.mxu0
    %v251 = vadd.f32 %v191, %v250
    %v252 = vpop.f32.mrf.mxu0
    %253 = vdwg.mxu0
    %v254 = vmax.f32 %v251, 0.0
    %v255 = vpack.c.bf16 %v254, %v254
    %v256 = vld [vmem:[#allocation8] sm:$0xf]
    %v257 = vld [vmem:[#allocation8 + $0x4] sm:$0xf]
    %v258 = vld [vmem:[#allocation8 + $0x8] sm:$0xf]
    %v259 = vld [vmem:[#allocation8 + $0xc] sm:$0xf]
    %v260 = vld [vmem:[#allocation8 + $0x10] sm:$0xf]
    %v261 = vld [vmem:[#allocation8 + $0x14] sm:$0xf]
    %v262 = vld [vmem:[#allocation8 + $0x18] sm:$0xf]
    %v263 = vld [vmem:[#allocation8 + $0x1c] sm:$0xf]
    %v264 = vld [vmem:[#allocation8 + $0x20] sm:$0xf]
    %v265 = vld [vmem:[#allocation8 + $0x24] sm:$0xf]
    %v266 = vld [vmem:[#allocation8 + $0x28] sm:$0xf]
    %v267 = vld [vmem:[#allocation8 + $0x2c] sm:$0xf]
    %v268 = vld [vmem:[#allocation8 + $0x30] sm:$0xf]
    %v269 = vld [vmem:[#allocation8 + $0x34] sm:$0xf]
    %v270 = vld [vmem:[#allocation8 + $0x38] sm:$0xf]
    %v271 = vld [vmem:[#allocation8 + $0x3c] sm:$0xf]
    %v272 = vld [vmem:[#allocation10] sm:$0x1]
    %v274 = vperm.slane %v272, 0
    %v292 = vunpack.c.l.b16 %v256
    %v293 = vunpack.c.l.b16 %v257
    %v294 = vunpack.c.l.b16 %v258
    %v295 = vunpack.c.l.b16 %v259
    %v296 = vunpack.c.l.b16 %v260
    %v297 = vunpack.c.l.b16 %v261
    %v298 = vunpack.c.l.b16 %v262
    %v299 = vunpack.c.l.b16 %v263
    %v300 = vunpack.c.l.b16 %v264
    %v301 = vunpack.c.l.b16 %v265
    %v302 = vunpack.c.l.b16 %v266
    %v303 = vunpack.c.l.b16 %v267
    %v304 = vunpack.c.l.b16 %v268
    %v305 = vunpack.c.l.b16 %v269
    %v306 = vunpack.c.l.b16 %v270
    %v307 = vunpack.c.l.b16 %v271
    %v308 = vpack.c.b16 %v293, %v292
    %v309 = vpack.c.b16 %v295, %v294
    %v310 = vpack.c.b16 %v297, %v296
    %v311 = vpack.c.b16 %v299, %v298
    %v312 = vpack.c.b16 %v301, %v300
    %v313 = vpack.c.b16 %v303, %v302
    %v314 = vpack.c.b16 %v305, %v304
    %v315 = vpack.c.b16 %v307, %v306
    %324 = vmatpush.bf16.msra.mxu0 %v315
    %325 = vmatpush.bf16.msra.mxu0 %v314
    %326 = vmatpush.bf16.msra.mxu0 %v313
    %327 = vmatpush.bf16.msra.mxu0 %v312
    %328 = vmatpush.bf16.msra.mxu0 %v311
    %329 = vmatpush.bf16.msra.mxu0 %v310
    %330 = vmatpush.bf16.msra.mxu0 %v309
    %331 = vmatpush.bf16.msra.mxu0 %v308
    %332 = vmatmul.bf16.gmra.mxu0 %v255
    %v333 = vpop.f32.mrf.mxu0
    %v334 = vadd.f32 %v274, %v333
    %v335 = vpop.f32.mrf.mxu0
    %336 = vdwg.mxu0
    %v337 = vmax.f32 %v334, 0.0
    %v338 = vpack.c.bf16 %v337, %v337
    %v339 = vld [vmem:[#allocation11] sm:$0xff]
    %v340 = vld [vmem:[#allocation11 + $0x8] sm:$0xff]
    %v341 = vld [vmem:[#allocation11 + $0x10] sm:$0xff]
    %v342 = vld [vmem:[#allocation11 + $0x18] sm:$0xff]
    %v343 = vld [vmem:[#allocation11 + $0x20] sm:$0xff]
    %v344 = vld [vmem:[#allocation11 + $0x28] sm:$0xff]
    %v345 = vld [vmem:[#allocation11 + $0x30] sm:$0xff]
    %v346 = vld [vmem:[#allocation11 + $0x38] sm:$0xff]
    %v347 = vld [vmem:[#allocation11 + $0x40] sm:$0xff]
    %v348 = vld [vmem:[#allocation11 + $0x48] sm:$0xff]
    %v349 = vld [vmem:[#allocation11 + $0x50] sm:$0xff]
    %v350 = vld [vmem:[#allocation11 + $0x58] sm:$0xff]
    %v351 = vld [vmem:[#allocation11 + $0x60] sm:$0xff]
    %v352 = vld [vmem:[#allocation11 + $0x68] sm:$0xff]
    %v353 = vld [vmem:[#allocation11 + $0x70] sm:$0xff]
    %v354 = vld [vmem:[#allocation11 + $0x78] sm:$0xff]
    %v355 = vld [vmem:[%s6] sm:$0x3]
    %v357 = vperm.slane %v355, 0
    %v358 = vperm.slane %v355, 1
    %v377 = vunpack.c.l.b16 %v339
    %v378 = vunpack.c.h.b16 %v339
    %v379 = vunpack.c.l.b16 %v340
    %v380 = vunpack.c.h.b16 %v340
    %v381 = vunpack.c.l.b16 %v341
    %v382 = vunpack.c.h.b16 %v341
    %v383 = vunpack.c.l.b16 %v342
    %v384 = vunpack.c.h.b16 %v342
    %v385 = vunpack.c.l.b16 %v343
    %v386 = vunpack.c.h.b16 %v343
    %v387 = vunpack.c.l.b16 %v344
    %v388 = vunpack.c.h.b16 %v344
    %v389 = vunpack.c.l.b16 %v345
    %v390 = vunpack.c.h.b16 %v345
    %v391 = vunpack.c.l.b16 %v346
    %v392 = vunpack.c.h.b16 %v346
    %v393 = vunpack.c.l.b16 %v347
    %v394 = vunpack.c.h.b16 %v347
    %v395 = vunpack.c.l.b16 %v348
    %v396 = vunpack.c.h.b16 %v348
    %v397 = vunpack.c.l.b16 %v349
    %v398 = vunpack.c.h.b16 %v349
    %v399 = vunpack.c.l.b16 %v350
    %v400 = vunpack.c.h.b16 %v350
    %v401 = vunpack.c.l.b16 %v351
    %v402 = vunpack.c.h.b16 %v351
    %v403 = vunpack.c.l.b16 %v352
    %v404 = vunpack.c.h.b16 %v352
    %v405 = vunpack.c.l.b16 %v353
    %v406 = vunpack.c.h.b16 %v353
    %v407 = vunpack.c.l.b16 %v354
    %v408 = vunpack.c.h.b16 %v354
    %v409 = vpack.c.b16 %v379, %v377
    %v410 = vpack.c.b16 %v380, %v378
    %v411 = vpack.c.b16 %v383, %v381
    %v412 = vpack.c.b16 %v384, %v382
    %v413 = vpack.c.b16 %v387, %v385
    %v414 = vpack.c.b16 %v388, %v386
    %v415 = vpack.c.b16 %v391, %v389
    %v416 = vpack.c.b16 %v392, %v390
    %v417 = vpack.c.b16 %v395, %v393
    %v418 = vpack.c.b16 %v396, %v394
    %v419 = vpack.c.b16 %v399, %v397
    %v420 = vpack.c.b16 %v400, %v398
    %v421 = vpack.c.b16 %v403, %v401
    %v422 = vpack.c.b16 %v404, %v402
    %v423 = vpack.c.b16 %v407, %v405
    %v424 = vpack.c.b16 %v408, %v406
    %441 = vmatpush.bf16.msra.mxu0 %v423
    %442 = vmatpush.bf16.msra.mxu0 %v421
    %443 = vmatpush.bf16.msra.mxu0 %v419
    %444 = vmatpush.bf16.msra.mxu0 %v417
    %445 = vmatpush.bf16.msra.mxu0 %v415
    %446 = vmatpush.bf16.msra.mxu0 %v413
    %447 = vmatpush.bf16.msra.mxu0 %v411
    %448 = vmatpush.bf16.msra.mxu0 %v409
    %449 = vmatmul.bf16.gmra.mxu0 %v338
    %v450 = vpop.f32.mrf.mxu0
    %v451 = vadd.f32 %v357, %v450
    %v452 = vpop.f32.mrf.mxu0
    %453 = vdwg.mxu0
    %454 = vmatpush.bf16.msra.mxu0 %v424
    %455 = vmatpush.bf16.msra.mxu0 %v422
    %456 = vmatpush.bf16.msra.mxu0 %v420
    %457 = vmatpush.bf16.msra.mxu0 %v418
    %458 = vmatpush.bf16.msra.mxu0 %v416
    %459 = vmatpush.bf16.msra.mxu0 %v414
    %460 = vmatpush.bf16.msra.mxu0 %v412
    %461 = vmatpush.bf16.msra.mxu0 %v410
    %462 = vmatmul.bf16.gmra.mxu0 %v338
    %v463 = vpop.f32.mrf.mxu0
    %v464 = vadd.f32 %v358, %v463
    %v465 = vpop.f32.mrf.mxu0
    %466 = vdwg.mxu0
    %v467 = vmax.f32 %v451, 0.0
    %v468 = vmax.f32 %v464, 0.0
    %v469 = vpack.c.bf16 %v467, %v467
    %v470 = vpack.c.bf16 %v468, %v468
    %v471 = vld [vmem:[#allocation13] sm:$0xff]
    %v472 = vld [vmem:[#allocation13 + $0x8] sm:$0xff]
    %v473 = vld [vmem:[#allocation13 + $0x10] sm:$0xff]
    %v474 = vld [vmem:[#allocation13 + $0x18] sm:$0xff]
    %v475 = vld [vmem:[#allocation13 + $0x20] sm:$0xff]
    %v476 = vld [vmem:[#allocation13 + $0x28] sm:$0xff]
    %v477 = vld [vmem:[#allocation13 + $0x30] sm:$0xff]
    %v478 = vld [vmem:[#allocation13 + $0x38] sm:$0xff]
    %v479 = vld [vmem:[#allocation13 + $0x40] sm:$0xff]
    %v480 = vld [vmem:[#allocation13 + $0x48] sm:$0xff]
    %v481 = vld [vmem:[#allocation13 + $0x50] sm:$0xff]
    %v482 = vld [vmem:[#allocation13 + $0x58] sm:$0xff]
    %v483 = vld [vmem:[#allocation13 + $0x60] sm:$0xff]
    %v484 = vld [vmem:[#allocation13 + $0x68] sm:$0xff]
    %v485 = vld [vmem:[#allocation13 + $0x70] sm:$0xff]
    %v486 = vld [vmem:[#allocation13 + $0x78] sm:$0xff]
    %v487 = vld [vmem:[#allocation13 + $0x80] sm:$0xff]
    %v488 = vld [vmem:[#allocation13 + $0x88] sm:$0xff]
    %v489 = vld [vmem:[#allocation13 + $0x90] sm:$0xff]
    %v490 = vld [vmem:[#allocation13 + $0x98] sm:$0xff]
    %v491 = vld [vmem:[#allocation13 + $0xa0] sm:$0xff]
    %v492 = vld [vmem:[#allocation13 + $0xa8] sm:$0xff]
    %v493 = vld [vmem:[#allocation13 + $0xb0] sm:$0xff]
    %v494 = vld [vmem:[#allocation13 + $0xb8] sm:$0xff]
    %v495 = vld [vmem:[#allocation13 + $0xc0] sm:$0xff]
    %v496 = vld [vmem:[#allocation13 + $0xc8] sm:$0xff]
    %v497 = vld [vmem:[#allocation13 + $0xd0] sm:$0xff]
    %v498 = vld [vmem:[#allocation13 + $0xd8] sm:$0xff]
    %v499 = vld [vmem:[#allocation13 + $0xe0] sm:$0xff]
    %v500 = vld [vmem:[#allocation13 + $0xe8] sm:$0xff]
    %v501 = vld [vmem:[#allocation13 + $0xf0] sm:$0xff]
    %v502 = vld [vmem:[#allocation13 + $0xf8] sm:$0xff]
    %v503 = vld [vmem:[#allocation13 + $0x100] sm:$0xff]
    %v504 = vld [vmem:[#allocation13 + $0x108] sm:$0xff]
    %v505 = vld [vmem:[#allocation13 + $0x110] sm:$0xff]
    %v506 = vld [vmem:[#allocation13 + $0x118] sm:$0xff]
    %v507 = vld [vmem:[#allocation13 + $0x120] sm:$0xff]
    %v508 = vld [vmem:[#allocation13 + $0x128] sm:$0xff]
    %v509 = vld [vmem:[#allocation13 + $0x130] sm:$0xff]
    %v510 = vld [vmem:[#allocation13 + $0x138] sm:$0xff]
    %v511 = vld [vmem:[#allocation13 + $0x140] sm:$0xff]
    %v512 = vld [vmem:[#allocation13 + $0x148] sm:$0xff]
    %v513 = vld [vmem:[#allocation13 + $0x150] sm:$0xff]
    %v514 = vld [vmem:[#allocation13 + $0x158] sm:$0xff]
    %v515 = vld [vmem:[#allocation13 + $0x160] sm:$0xff]
    %v516 = vld [vmem:[#allocation13 + $0x168] sm:$0xff]
    %v517 = vld [vmem:[#allocation13 + $0x170] sm:$0xff]
    %v518 = vld [vmem:[#allocation13 + $0x178] sm:$0xff]
    %v519 = vld [vmem:[#allocation13 + $0x180] sm:$0xff]
    %v520 = vld [vmem:[#allocation13 + $0x188] sm:$0xff]
    %v521 = vld [vmem:[#allocation13 + $0x190] sm:$0xff]
    %v522 = vld [vmem:[#allocation13 + $0x198] sm:$0xff]
    %v523 = vld [vmem:[#allocation13 + $0x1a0] sm:$0xff]
    %v524 = vld [vmem:[#allocation13 + $0x1a8] sm:$0xff]
    %v525 = vld [vmem:[#allocation13 + $0x1b0] sm:$0xff]
    %v526 = vld [vmem:[#allocation13 + $0x1b8] sm:$0xff]
    %v527 = vld [vmem:[#allocation13 + $0x1c0] sm:$0xff]
    %v528 = vld [vmem:[#allocation13 + $0x1c8] sm:$0xff]
    %v529 = vld [vmem:[#allocation13 + $0x1d0] sm:$0xff]
    %v530 = vld [vmem:[#allocation13 + $0x1d8] sm:$0xff]
    %v531 = vld [vmem:[#allocation13 + $0x1e0] sm:$0xff]
    %v532 = vld [vmem:[#allocation13 + $0x1e8] sm:$0xff]
    %v533 = vld [vmem:[#allocation13 + $0x1f0] sm:$0xff]
    %v534 = vld [vmem:[#allocation13 + $0x1f8] sm:$0xff]
    %v535 = vld [vmem:[#allocation14] sm:$0xf]
    %v537 = vperm.slane %v535, 0
    %v538 = vperm.slane %v535, 1
    %v539 = vperm.slane %v535, 2
    %v540 = vperm.slane %v535, 3
    %v609 = vunpack.c.l.b16 %v471
    %v610 = vunpack.c.h.b16 %v471
    %v611 = vunpack.c.l.b16 %v472
    %v612 = vunpack.c.h.b16 %v472
    %v613 = vunpack.c.l.b16 %v473
    %v614 = vunpack.c.h.b16 %v473
    %v615 = vunpack.c.l.b16 %v474
    %v616 = vunpack.c.h.b16 %v474
    %v617 = vunpack.c.l.b16 %v475
    %v618 = vunpack.c.h.b16 %v475
    %v619 = vunpack.c.l.b16 %v476
    %v620 = vunpack.c.h.b16 %v476
    %v621 = vunpack.c.l.b16 %v477
    %v622 = vunpack.c.h.b16 %v477
    %v623 = vunpack.c.l.b16 %v478
    %v624 = vunpack.c.h.b16 %v478
    %v625 = vunpack.c.l.b16 %v479
    %v626 = vunpack.c.h.b16 %v479
    %v627 = vunpack.c.l.b16 %v480
    %v628 = vunpack.c.h.b16 %v480
    %v629 = vunpack.c.l.b16 %v481
    %v630 = vunpack.c.h.b16 %v481
    %v631 = vunpack.c.l.b16 %v482
    %v632 = vunpack.c.h.b16 %v482
    %v633 = vunpack.c.l.b16 %v483
    %v634 = vunpack.c.h.b16 %v483
    %v635 = vunpack.c.l.b16 %v484
    %v636 = vunpack.c.h.b16 %v484
    %v637 = vunpack.c.l.b16 %v485
    %v638 = vunpack.c.h.b16 %v485
    %v639 = vunpack.c.l.b16 %v486
    %v640 = vunpack.c.h.b16 %v486
    %v641 = vunpack.c.l.b16 %v487
    %v642 = vunpack.c.h.b16 %v487
    %v643 = vunpack.c.l.b16 %v488
    %v644 = vunpack.c.h.b16 %v488
    %v645 = vunpack.c.l.b16 %v489
    %v646 = vunpack.c.h.b16 %v489
    %v647 = vunpack.c.l.b16 %v490
    %v648 = vunpack.c.h.b16 %v490
    %v649 = vunpack.c.l.b16 %v491
    %v650 = vunpack.c.h.b16 %v491
    %v651 = vunpack.c.l.b16 %v492
    %v652 = vunpack.c.h.b16 %v492
    %v653 = vunpack.c.l.b16 %v493
    %v654 = vunpack.c.h.b16 %v493
    %v655 = vunpack.c.l.b16 %v494
    %v656 = vunpack.c.h.b16 %v494
    %v657 = vunpack.c.l.b16 %v495
    %v658 = vunpack.c.h.b16 %v495
    %v659 = vunpack.c.l.b16 %v496
    %v660 = vunpack.c.h.b16 %v496
    %v661 = vunpack.c.l.b16 %v497
    %v662 = vunpack.c.h.b16 %v497
    %v663 = vunpack.c.l.b16 %v498
    %v664 = vunpack.c.h.b16 %v498
    %v665 = vunpack.c.l.b16 %v499
    %v666 = vunpack.c.h.b16 %v499
    %v667 = vunpack.c.l.b16 %v500
    %v668 = vunpack.c.h.b16 %v500
    %v669 = vunpack.c.l.b16 %v501
    %v670 = vunpack.c.h.b16 %v501
    %v671 = vunpack.c.l.b16 %v502
    %v672 = vunpack.c.h.b16 %v502
    %v673 = vunpack.c.l.b16 %v503
    %v674 = vunpack.c.h.b16 %v503
    %v675 = vunpack.c.l.b16 %v504
    %v676 = vunpack.c.h.b16 %v504
    %v677 = vunpack.c.l.b16 %v505
    %v678 = vunpack.c.h.b16 %v505
    %v679 = vunpack.c.l.b16 %v506
    %v680 = vunpack.c.h.b16 %v506
    %v681 = vunpack.c.l.b16 %v507
    %v682 = vunpack.c.h.b16 %v507
    %v683 = vunpack.c.l.b16 %v508
    %v684 = vunpack.c.h.b16 %v508
    %v685 = vunpack.c.l.b16 %v509
    %v686 = vunpack.c.h.b16 %v509
    %v687 = vunpack.c.l.b16 %v510
    %v688 = vunpack.c.h.b16 %v510
    %v689 = vunpack.c.l.b16 %v511
    %v690 = vunpack.c.h.b16 %v511
    %v691 = vunpack.c.l.b16 %v512
    %v692 = vunpack.c.h.b16 %v512
    %v693 = vunpack.c.l.b16 %v513
    %v694 = vunpack.c.h.b16 %v513
    %v695 = vunpack.c.l.b16 %v514
    %v696 = vunpack.c.h.b16 %v514
    %v697 = vunpack.c.l.b16 %v515
    %v698 = vunpack.c.h.b16 %v515
    %v699 = vunpack.c.l.b16 %v516
    %v700 = vunpack.c.h.b16 %v516
    %v701 = vunpack.c.l.b16 %v517
    %v702 = vunpack.c.h.b16 %v517
    %v703 = vunpack.c.l.b16 %v518
    %v704 = vunpack.c.h.b16 %v518
    %v705 = vunpack.c.l.b16 %v519
    %v706 = vunpack.c.h.b16 %v519
    %v707 = vunpack.c.l.b16 %v520
    %v708 = vunpack.c.h.b16 %v520
    %v709 = vunpack.c.l.b16 %v521
    %v710 = vunpack.c.h.b16 %v521
    %v711 = vunpack.c.l.b16 %v522
    %v712 = vunpack.c.h.b16 %v522
    %v713 = vunpack.c.l.b16 %v523
    %v714 = vunpack.c.h.b16 %v523
    %v715 = vunpack.c.l.b16 %v524
    %v716 = vunpack.c.h.b16 %v524
    %v717 = vunpack.c.l.b16 %v525
    %v718 = vunpack.c.h.b16 %v525
    %v719 = vunpack.c.l.b16 %v526
    %v720 = vunpack.c.h.b16 %v526
    %v721 = vunpack.c.l.b16 %v527
    %v722 = vunpack.c.h.b16 %v527
    %v723 = vunpack.c.l.b16 %v528
    %v724 = vunpack.c.h.b16 %v528
    %v725 = vunpack.c.l.b16 %v529
    %v726 = vunpack.c.h.b16 %v529
    %v727 = vunpack.c.l.b16 %v530
    %v728 = vunpack.c.h.b16 %v530
    %v729 = vunpack.c.l.b16 %v531
    %v730 = vunpack.c.h.b16 %v531
    %v731 = vunpack.c.l.b16 %v532
    %v732 = vunpack.c.h.b16 %v532
    %v733 = vunpack.c.l.b16 %v533
    %v734 = vunpack.c.h.b16 %v533
    %v735 = vunpack.c.l.b16 %v534
    %v736 = vunpack.c.h.b16 %v534
    %v737 = vpack.c.b16 %v613, %v609
    %v738 = vpack.c.b16 %v614, %v610
    %v739 = vpack.c.b16 %v615, %v611
    %v740 = vpack.c.b16 %v616, %v612
    %v741 = vpack.c.b16 %v621, %v617
    %v742 = vpack.c.b16 %v622, %v618
    %v743 = vpack.c.b16 %v623, %v619
    %v744 = vpack.c.b16 %v624, %v620
    %v745 = vpack.c.b16 %v629, %v625
    %v746 = vpack.c.b16 %v630, %v626
    %v747 = vpack.c.b16 %v631, %v627
    %v748 = vpack.c.b16 %v632, %v628
    %v749 = vpack.c.b16 %v637, %v633
    %v750 = vpack.c.b16 %v638, %v634
    %v751 = vpack.c.b16 %v639, %v635
    %v752 = vpack.c.b16 %v640, %v636
    %v753 = vpack.c.b16 %v645, %v641
    %v754 = vpack.c.b16 %v646, %v642
    %v755 = vpack.c.b16 %v647, %v643
    %v756 = vpack.c.b16 %v648, %v644
    %v757 = vpack.c.b16 %v653, %v649
    %v758 = vpack.c.b16 %v654, %v650
    %v759 = vpack.c.b16 %v655, %v651
    %v760 = vpack.c.b16 %v656, %v652
    %v761 = vpack.c.b16 %v661, %v657
    %v762 = vpack.c.b16 %v662, %v658
    %v763 = vpack.c.b16 %v663, %v659
    %v764 = vpack.c.b16 %v664, %v660
    %v765 = vpack.c.b16 %v669, %v665
    %v766 = vpack.c.b16 %v670, %v666
    %v767 = vpack.c.b16 %v671, %v667
    %v768 = vpack.c.b16 %v672, %v668
    %v769 = vpack.c.b16 %v677, %v673
    %v770 = vpack.c.b16 %v678, %v674
    %v771 = vpack.c.b16 %v679, %v675
    %v772 = vpack.c.b16 %v680, %v676
    %v773 = vpack.c.b16 %v685, %v681
    %v774 = vpack.c.b16 %v686, %v682
    %v775 = vpack.c.b16 %v687, %v683
    %v776 = vpack.c.b16 %v688, %v684
    %v777 = vpack.c.b16 %v693, %v689
    %v778 = vpack.c.b16 %v694, %v690
    %v779 = vpack.c.b16 %v695, %v691
    %v780 = vpack.c.b16 %v696, %v692
    %v781 = vpack.c.b16 %v701, %v697
    %v782 = vpack.c.b16 %v702, %v698
    %v783 = vpack.c.b16 %v703, %v699
    %v784 = vpack.c.b16 %v704, %v700
    %v785 = vpack.c.b16 %v709, %v705
    %v786 = vpack.c.b16 %v710, %v706
    %v787 = vpack.c.b16 %v711, %v707
    %v788 = vpack.c.b16 %v712, %v708
    %v789 = vpack.c.b16 %v717, %v713
    %v790 = vpack.c.b16 %v718, %v714
    %v791 = vpack.c.b16 %v719, %v715
    %v792 = vpack.c.b16 %v720, %v716
    %v793 = vpack.c.b16 %v725, %v721
    %v794 = vpack.c.b16 %v726, %v722
    %v795 = vpack.c.b16 %v727, %v723
    %v796 = vpack.c.b16 %v728, %v724
    %v797 = vpack.c.b16 %v733, %v729
    %v798 = vpack.c.b16 %v734, %v730
    %v799 = vpack.c.b16 %v735, %v731
    %v800 = vpack.c.b16 %v736, %v732
    %865 = vmatpush.bf16.msra.mxu0 %v765
    %866 = vmatpush.bf16.msra.mxu0 %v761
    %867 = vmatpush.bf16.msra.mxu0 %v757
    %868 = vmatpush.bf16.msra.mxu0 %v753
    %869 = vmatpush.bf16.msra.mxu0 %v749
    %870 = vmatpush.bf16.msra.mxu0 %v745
    %871 = vmatpush.bf16.msra.mxu0 %v741
    %872 = vmatpush.bf16.msra.mxu0 %v737
    %873 = vmatmul.bf16.gmra.mxu0 %v469
    %v874 = vpop.f32.mrf.mxu0
    %v875 = vadd.f32 %v537, %v874
    %v876 = vpop.f32.mrf.mxu0
    %877 = vdwg.mxu0
    %878 = vmatpush.bf16.msra.mxu0 %v797
    %879 = vmatpush.bf16.msra.mxu0 %v793
    %880 = vmatpush.bf16.msra.mxu0 %v789
    %881 = vmatpush.bf16.msra.mxu0 %v785
    %882 = vmatpush.bf16.msra.mxu0 %v781
    %883 = vmatpush.bf16.msra.mxu0 %v777
    %884 = vmatpush.bf16.msra.mxu0 %v773
    %885 = vmatpush.bf16.msra.mxu0 %v769
    %886 = vmatmul.bf16.gmra.mxu0 %v470
    %v887 = vpop.f32.mrf.mxu0
    %v888 = vadd.f32 %v875, %v887
    %v889 = vpop.f32.mrf.mxu0
    %890 = vdwg.mxu0
    %891 = vmatpush.bf16.msra.mxu0 %v766
    %892 = vmatpush.bf16.msra.mxu0 %v762
    %893 = vmatpush.bf16.msra.mxu0 %v758
    %894 = vmatpush.bf16.msra.mxu0 %v754
    %895 = vmatpush.bf16.msra.mxu0 %v750
    %896 = vmatpush.bf16.msra.mxu0 %v746
    %897 = vmatpush.bf16.msra.mxu0 %v742
    %898 = vmatpush.bf16.msra.mxu0 %v738
    %899 = vmatmul.bf16.gmra.mxu0 %v469
    %v900 = vpop.f32.mrf.mxu0
    %v901 = vadd.f32 %v538, %v900
    %v902 = vpop.f32.mrf.mxu0
    %903 = vdwg.mxu0
    %904 = vmatpush.bf16.msra.mxu0 %v798
    %905 = vmatpush.bf16.msra.mxu0 %v794
    %906 = vmatpush.bf16.msra.mxu0 %v790
    %907 = vmatpush.bf16.msra.mxu0 %v786
    %908 = vmatpush.bf16.msra.mxu0 %v782
    %909 = vmatpush.bf16.msra.mxu0 %v778
    %910 = vmatpush.bf16.msra.mxu0 %v774
    %911 = vmatpush.bf16.msra.mxu0 %v770
    %912 = vmatmul.bf16.gmra.mxu0 %v470
    %v913 = vpop.f32.mrf.mxu0
    %v914 = vadd.f32 %v901, %v913
    %v915 = vpop.f32.mrf.mxu0
    %916 = vdwg.mxu0
    %917 = vmatpush.bf16.msra.mxu0 %v767
    %918 = vmatpush.bf16.msra.mxu0 %v763
    %919 = vmatpush.bf16.msra.mxu0 %v759
    %920 = vmatpush.bf16.msra.mxu0 %v755
    %921 = vmatpush.bf16.msra.mxu0 %v751
    %922 = vmatpush.bf16.msra.mxu0 %v747
    %923 = vmatpush.bf16.msra.mxu0 %v743
    %924 = vmatpush.bf16.msra.mxu0 %v739
    %925 = vmatmul.bf16.gmra.mxu0 %v469
    %v926 = vpop.f32.mrf.mxu0
    %v927 = vadd.f32 %v539, %v926
    %v928 = vpop.f32.mrf.mxu0
    %929 = vdwg.mxu0
    %930 = vmatpush.bf16.msra.mxu0 %v799
    %931 = vmatpush.bf16.msra.mxu0 %v795
    %932 = vmatpush.bf16.msra.mxu0 %v791
    %933 = vmatpush.bf16.msra.mxu0 %v787
    %934 = vmatpush.bf16.msra.mxu0 %v783
    %935 = vmatpush.bf16.msra.mxu0 %v779
    %936 = vmatpush.bf16.msra.mxu0 %v775
    %937 = vmatpush.bf16.msra.mxu0 %v771
    %938 = vmatmul.bf16.gmra.mxu0 %v470
    %v939 = vpop.f32.mrf.mxu0
    %v940 = vadd.f32 %v927, %v939
    %v941 = vpop.f32.mrf.mxu0
    %942 = vdwg.mxu0
    %943 = vmatpush.bf16.msra.mxu0 %v768
    %944 = vmatpush.bf16.msra.mxu0 %v764
    %945 = vmatpush.bf16.msra.mxu0 %v760
    %946 = vmatpush.bf16.msra.mxu0 %v756
    %947 = vmatpush.bf16.msra.mxu0 %v752
    %948 = vmatpush.bf16.msra.mxu0 %v748
    %949 = vmatpush.bf16.msra.mxu0 %v744
    %950 = vmatpush.bf16.msra.mxu0 %v740
    %951 = vmatmul.bf16.gmra.mxu0 %v469
    %v952 = vpop.f32.mrf.mxu0
    %v953 = vadd.f32 %v540, %v952
    %v954 = vpop.f32.mrf.mxu0
    %955 = vdwg.mxu0
    %956 = vmatpush.bf16.msra.mxu0 %v800
    %957 = vmatpush.bf16.msra.mxu0 %v796
    %958 = vmatpush.bf16.msra.mxu0 %v792
    %959 = vmatpush.bf16.msra.mxu0 %v788
    %960 = vmatpush.bf16.msra.mxu0 %v784
    %961 = vmatpush.bf16.msra.mxu0 %v780
    %962 = vmatpush.bf16.msra.mxu0 %v776
    %963 = vmatpush.bf16.msra.mxu0 %v772
    %964 = vmatmul.bf16.gmra.mxu0 %v470
    %v965 = vpop.f32.mrf.mxu0
    %v966 = vadd.f32 %v953, %v965
    %v967 = vpop.f32.mrf.mxu0
    %968 = vdwg.mxu0
    %v969 = vmax.f32 %v888, 0.0
    %v970 = vmax.f32 %v914, 0.0
    %v971 = vmax.f32 %v940, 0.0
    %v972 = vmax.f32 %v966, 0.0
    %v973 = vpack.c.bf16 %v969, %v969
    %v974 = vpack.c.bf16 %v970, %v970
    %v975 = vpack.c.bf16 %v971, %v971
    %v976 = vpack.c.bf16 %v972, %v972
    %v977 = vld [vmem:[#allocation16] sm:$0xff]
    %v978 = vld [vmem:[#allocation16 + $0x8] sm:$0xff]
    %v979 = vld [vmem:[#allocation16 + $0x10] sm:$0xff]
    %v980 = vld [vmem:[#allocation16 + $0x18] sm:$0xf]
    %v981 = vld [vmem:[#allocation16 + $0x1c] sm:$0xff]
    %v982 = vld [vmem:[#allocation16 + $0x24] sm:$0xff]
    %v983 = vld [vmem:[#allocation16 + $0x2c] sm:$0xff]
    %v984 = vld [vmem:[#allocation16 + $0x34] sm:$0xf]
    %v985 = vld [vmem:[#allocation16 + $0x38] sm:$0xff]
    %v986 = vld [vmem:[#allocation16 + $0x40] sm:$0xff]
    %v987 = vld [vmem:[#allocation16 + $0x48] sm:$0xff]
    %v988 = vld [vmem:[#allocation16 + $0x50] sm:$0xf]
    %v989 = vld [vmem:[#allocation16 + $0x54] sm:$0xff]
    %v990 = vld [vmem:[#allocation16 + $0x5c] sm:$0xff]
    %v991 = vld [vmem:[#allocation16 + $0x64] sm:$0xff]
    %v992 = vld [vmem:[#allocation16 + $0x6c] sm:$0xf]
    %v993 = vld [vmem:[#allocation16 + $0x70] sm:$0xff]
    %v994 = vld [vmem:[#allocation16 + $0x78] sm:$0xff]
    %v995 = vld [vmem:[#allocation16 + $0x80] sm:$0xff]
    %v996 = vld [vmem:[#allocation16 + $0x88] sm:$0xf]
    %v997 = vld [vmem:[#allocation16 + $0x8c] sm:$0xff]
    %v998 = vld [vmem:[#allocation16 + $0x94] sm:$0xff]
    %v999 = vld [vmem:[#allocation16 + $0x9c] sm:$0xff]
    %v1000 = vld [vmem:[#allocation16 + $0xa4] sm:$0xf]
    %v1001 = vld [vmem:[#allocation16 + $0xa8] sm:$0xff]
    %v1002 = vld [vmem:[#allocation16 + $0xb0] sm:$0xff]
    %v1003 = vld [vmem:[#allocation16 + $0xb8] sm:$0xff]
    %v1004 = vld [vmem:[#allocation16 + $0xc0] sm:$0xf]
    %v1005 = vld [vmem:[#allocation16 + $0xc4] sm:$0xff]
    %v1006 = vld [vmem:[#allocation16 + $0xcc] sm:$0xff]
    %v1007 = vld [vmem:[#allocation16 + $0xd4] sm:$0xff]
    %v1008 = vld [vmem:[#allocation16 + $0xdc] sm:$0xf]
    %v1009 = vld [vmem:[#allocation16 + $0xe0] sm:$0xff]
    %v1010 = vld [vmem:[#allocation16 + $0xe8] sm:$0xff]
    %v1011 = vld [vmem:[#allocation16 + $0xf0] sm:$0xff]
    %v1012 = vld [vmem:[#allocation16 + $0xf8] sm:$0xf]
    %v1013 = vld [vmem:[#allocation16 + $0xfc] sm:$0xff]
    %v1014 = vld [vmem:[#allocation16 + $0x104] sm:$0xff]
    %v1015 = vld [vmem:[#allocation16 + $0x10c] sm:$0xff]
    %v1016 = vld [vmem:[#allocation16 + $0x114] sm:$0xf]
    %v1017 = vld [vmem:[#allocation16 + $0x118] sm:$0xff]
    %v1018 = vld [vmem:[#allocation16 + $0x120] sm:$0xff]
    %v1019 = vld [vmem:[#allocation16 + $0x128] sm:$0xff]
    %v1020 = vld [vmem:[#allocation16 + $0x130] sm:$0xf]
    %v1021 = vld [vmem:[#allocation16 + $0x134] sm:$0xff]
    %v1022 = vld [vmem:[#allocation16 + $0x13c] sm:$0xff]
    %v1023 = vld [vmem:[#allocation16 + $0x144] sm:$0xff]
    %v1024 = vld [vmem:[#allocation16 + $0x14c] sm:$0xf]
    %v1025 = vld [vmem:[#allocation16 + $0x150] sm:$0xff]
    %v1026 = vld [vmem:[#allocation16 + $0x158] sm:$0xff]
    %v1027 = vld [vmem:[#allocation16 + $0x160] sm:$0xff]
    %v1028 = vld [vmem:[#allocation16 + $0x168] sm:$0xf]
    %v1029 = vld [vmem:[#allocation16 + $0x16c] sm:$0xff]
    %v1030 = vld [vmem:[#allocation16 + $0x174] sm:$0xff]
    %v1031 = vld [vmem:[#allocation16 + $0x17c] sm:$0xff]
    %v1032 = vld [vmem:[#allocation16 + $0x184] sm:$0xf]
    %v1033 = vld [vmem:[#allocation16 + $0x188] sm:$0xff]
    %v1034 = vld [vmem:[#allocation16 + $0x190] sm:$0xff]
    %v1035 = vld [vmem:[#allocation16 + $0x198] sm:$0xff]
    %v1036 = vld [vmem:[#allocation16 + $0x1a0] sm:$0xf]
    %v1037 = vld [vmem:[#allocation16 + $0x1a4] sm:$0xff]
    %v1038 = vld [vmem:[#allocation16 + $0x1ac] sm:$0xff]
    %v1039 = vld [vmem:[#allocation16 + $0x1b4] sm:$0xff]
    %v1040 = vld [vmem:[#allocation16 + $0x1bc] sm:$0xf]
    %v1041 = vld [vmem:[#allocation16 + $0x1c0] sm:$0xff]
    %v1042 = vld [vmem:[#allocation16 + $0x1c8] sm:$0xff]
    %v1043 = vld [vmem:[#allocation16 + $0x1d0] sm:$0xff]
    %v1044 = vld [vmem:[#allocation16 + $0x1d8] sm:$0xf]
    %v1045 = vld [vmem:[#allocation16 + $0x1dc] sm:$0xff]
    %v1046 = vld [vmem:[#allocation16 + $0x1e4] sm:$0xff]
    %v1047 = vld [vmem:[#allocation16 + $0x1ec] sm:$0xff]
    %v1048 = vld [vmem:[#allocation16 + $0x1f4] sm:$0xf]
    %v1049 = vld [vmem:[#allocation16 + $0x1f8] sm:$0xff]
    %v1050 = vld [vmem:[#allocation16 + $0x200] sm:$0xff]
    %v1051 = vld [vmem:[#allocation16 + $0x208] sm:$0xff]
    %v1052 = vld [vmem:[#allocation16 + $0x210] sm:$0xf]
    %v1053 = vld [vmem:[#allocation16 + $0x214] sm:$0xff]
    %v1054 = vld [vmem:[#allocation16 + $0x21c] sm:$0xff]
    %v1055 = vld [vmem:[#allocation16 + $0x224] sm:$0xff]
    %v1056 = vld [vmem:[#allocation16 + $0x22c] sm:$0xf]
    %v1057 = vld [vmem:[#allocation16 + $0x230] sm:$0xff]
    %v1058 = vld [vmem:[#allocation16 + $0x238] sm:$0xff]
    %v1059 = vld [vmem:[#allocation16 + $0x240] sm:$0xff]
    %v1060 = vld [vmem:[#allocation16 + $0x248] sm:$0xf]
    %v1061 = vld [vmem:[#allocation16 + $0x24c] sm:$0xff]
    %v1062 = vld [vmem:[#allocation16 + $0x254] sm:$0xff]
    %v1063 = vld [vmem:[#allocation16 + $0x25c] sm:$0xff]
    %v1064 = vld [vmem:[#allocation16 + $0x264] sm:$0xf]
    %v1065 = vld [vmem:[#allocation16 + $0x268] sm:$0xff]
    %v1066 = vld [vmem:[#allocation16 + $0x270] sm:$0xff]
    %v1067 = vld [vmem:[#allocation16 + $0x278] sm:$0xff]
    %v1068 = vld [vmem:[#allocation16 + $0x280] sm:$0xf]
    %v1069 = vld [vmem:[#allocation16 + $0x284] sm:$0xff]
    %v1070 = vld [vmem:[#allocation16 + $0x28c] sm:$0xff]
    %v1071 = vld [vmem:[#allocation16 + $0x294] sm:$0xff]
    %v1072 = vld [vmem:[#allocation16 + $0x29c] sm:$0xf]
    %v1073 = vld [vmem:[#allocation16 + $0x2a0] sm:$0xff]
    %v1074 = vld [vmem:[#allocation16 + $0x2a8] sm:$0xff]
    %v1075 = vld [vmem:[#allocation16 + $0x2b0] sm:$0xff]
    %v1076 = vld [vmem:[#allocation16 + $0x2b8] sm:$0xf]
    %v1077 = vld [vmem:[#allocation16 + $0x2bc] sm:$0xff]
    %v1078 = vld [vmem:[#allocation16 + $0x2c4] sm:$0xff]
    %v1079 = vld [vmem:[#allocation16 + $0x2cc] sm:$0xff]
    %v1080 = vld [vmem:[#allocation16 + $0x2d4] sm:$0xf]
    %v1081 = vld [vmem:[#allocation16 + $0x2d8] sm:$0xff]
    %v1082 = vld [vmem:[#allocation16 + $0x2e0] sm:$0xff]
    %v1083 = vld [vmem:[#allocation16 + $0x2e8] sm:$0xff]
    %v1084 = vld [vmem:[#allocation16 + $0x2f0] sm:$0xf]
    %v1085 = vld [vmem:[#allocation16 + $0x2f4] sm:$0xff]
    %v1086 = vld [vmem:[#allocation16 + $0x2fc] sm:$0xff]
    %v1087 = vld [vmem:[#allocation16 + $0x304] sm:$0xff]
    %v1088 = vld [vmem:[#allocation16 + $0x30c] sm:$0xf]
    %v1089 = vld [vmem:[#allocation16 + $0x310] sm:$0xff]
    %v1090 = vld [vmem:[#allocation16 + $0x318] sm:$0xff]
    %v1091 = vld [vmem:[#allocation16 + $0x320] sm:$0xff]
    %v1092 = vld [vmem:[#allocation16 + $0x328] sm:$0xf]
    %v1093 = vld [vmem:[#allocation16 + $0x32c] sm:$0xff]
    %v1094 = vld [vmem:[#allocation16 + $0x334] sm:$0xff]
    %v1095 = vld [vmem:[#allocation16 + $0x33c] sm:$0xff]
    %v1096 = vld [vmem:[#allocation16 + $0x344] sm:$0xf]
    %v1097 = vld [vmem:[#allocation16 + $0x348] sm:$0xff]
    %v1098 = vld [vmem:[#allocation16 + $0x350] sm:$0xff]
    %v1099 = vld [vmem:[#allocation16 + $0x358] sm:$0xff]
    %v1100 = vld [vmem:[#allocation16 + $0x360] sm:$0xf]
    %v1101 = vld [vmem:[#allocation16 + $0x364] sm:$0xff]
    %v1102 = vld [vmem:[#allocation16 + $0x36c] sm:$0xff]
    %v1103 = vld [vmem:[#allocation16 + $0x374] sm:$0xff]
    %v1104 = vld [vmem:[#allocation16 + $0x37c] sm:$0xf]
    %v1105 = vld [vmem:[#allocation16 + $0x380] sm:$0xff]
    %v1106 = vld [vmem:[#allocation16 + $0x388] sm:$0xff]
    %v1107 = vld [vmem:[#allocation16 + $0x390] sm:$0xff]
    %v1108 = vld [vmem:[#allocation16 + $0x398] sm:$0xf]
    %v1109 = vld [vmem:[#allocation16 + $0x39c] sm:$0xff]
    %v1110 = vld [vmem:[#allocation16 + $0x3a4] sm:$0xff]
    %v1111 = vld [vmem:[#allocation16 + $0x3ac] sm:$0xff]
    %v1112 = vld [vmem:[#allocation16 + $0x3b4] sm:$0xf]
    %v1113 = vld [vmem:[#allocation16 + $0x3b8] sm:$0xff]
    %v1114 = vld [vmem:[#allocation16 + $0x3c0] sm:$0xff]
    %v1115 = vld [vmem:[#allocation16 + $0x3c8] sm:$0xff]
    %v1116 = vld [vmem:[#allocation16 + $0x3d0] sm:$0xf]
    %v1117 = vld [vmem:[#allocation16 + $0x3d4] sm:$0xff]
    %v1118 = vld [vmem:[#allocation16 + $0x3dc] sm:$0xff]
    %v1119 = vld [vmem:[#allocation16 + $0x3e4] sm:$0xff]
    %v1120 = vld [vmem:[#allocation16 + $0x3ec] sm:$0xf]
    %v1121 = vld [vmem:[#allocation16 + $0x3f0] sm:$0xff]
    %v1122 = vld [vmem:[#allocation16 + $0x3f8] sm:$0xff]
    %v1123 = vld [vmem:[#allocation16 + $0x400] sm:$0xff]
    %v1124 = vld [vmem:[#allocation16 + $0x408] sm:$0xf]
    %v1125 = vld [vmem:[#allocation16 + $0x40c] sm:$0xff]
    %v1126 = vld [vmem:[#allocation16 + $0x414] sm:$0xff]
    %v1127 = vld [vmem:[#allocation16 + $0x41c] sm:$0xff]
    %v1128 = vld [vmem:[#allocation16 + $0x424] sm:$0xf]
    %v1129 = vld [vmem:[#allocation16 + $0x428] sm:$0xff]
    %v1130 = vld [vmem:[#allocation16 + $0x430] sm:$0xff]
    %v1131 = vld [vmem:[#allocation16 + $0x438] sm:$0xff]
    %v1132 = vld [vmem:[#allocation16 + $0x440] sm:$0xf]
    %v1133 = vld [vmem:[#allocation16 + $0x444] sm:$0xff]
    %v1134 = vld [vmem:[#allocation16 + $0x44c] sm:$0xff]
    %v1135 = vld [vmem:[#allocation16 + $0x454] sm:$0xff]
    %v1136 = vld [vmem:[#allocation16 + $0x45c] sm:$0xf]
    %v1137 = vld [vmem:[#allocation16 + $0x460] sm:$0xff]
    %v1138 = vld [vmem:[#allocation16 + $0x468] sm:$0xff]
    %v1139 = vld [vmem:[#allocation16 + $0x470] sm:$0xff]
    %v1140 = vld [vmem:[#allocation16 + $0x478] sm:$0xf]
    %v1141 = vld [vmem:[#allocation16 + $0x47c] sm:$0xff]
    %v1142 = vld [vmem:[#allocation16 + $0x484] sm:$0xff]
    %v1143 = vld [vmem:[#allocation16 + $0x48c] sm:$0xff]
    %v1144 = vld [vmem:[#allocation16 + $0x494] sm:$0xf]
    %v1145 = vld [vmem:[#allocation16 + $0x498] sm:$0xff]
    %v1146 = vld [vmem:[#allocation16 + $0x4a0] sm:$0xff]
    %v1147 = vld [vmem:[#allocation16 + $0x4a8] sm:$0xff]
    %v1148 = vld [vmem:[#allocation16 + $0x4b0] sm:$0xf]
    %v1149 = vld [vmem:[#allocation16 + $0x4b4] sm:$0xff]
    %v1150 = vld [vmem:[#allocation16 + $0x4bc] sm:$0xff]
    %v1151 = vld [vmem:[#allocation16 + $0x4c4] sm:$0xff]
    %v1152 = vld [vmem:[#allocation16 + $0x4cc] sm:$0xf]
    %v1153 = vld [vmem:[#allocation16 + $0x4d0] sm:$0xff]
    %v1154 = vld [vmem:[#allocation16 + $0x4d8] sm:$0xff]
    %v1155 = vld [vmem:[#allocation16 + $0x4e0] sm:$0xff]
    %v1156 = vld [vmem:[#allocation16 + $0x4e8] sm:$0xf]
    %v1157 = vld [vmem:[#allocation16 + $0x4ec] sm:$0xff]
    %v1158 = vld [vmem:[#allocation16 + $0x4f4] sm:$0xff]
    %v1159 = vld [vmem:[#allocation16 + $0x4fc] sm:$0xff]
    %v1160 = vld [vmem:[#allocation16 + $0x504] sm:$0xf]
    %v1161 = vld [vmem:[#allocation16 + $0x508] sm:$0xff]
    %v1162 = vld [vmem:[#allocation16 + $0x510] sm:$0xff]
    %v1163 = vld [vmem:[#allocation16 + $0x518] sm:$0xff]
    %v1164 = vld [vmem:[#allocation16 + $0x520] sm:$0xf]
    %v1165 = vld [vmem:[#allocation16 + $0x524] sm:$0xff]
    %v1166 = vld [vmem:[#allocation16 + $0x52c] sm:$0xff]
    %v1167 = vld [vmem:[#allocation16 + $0x534] sm:$0xff]
    %v1168 = vld [vmem:[#allocation16 + $0x53c] sm:$0xf]
    %v1169 = vld [vmem:[#allocation16 + $0x540] sm:$0xff]
    %v1170 = vld [vmem:[#allocation16 + $0x548] sm:$0xff]
    %v1171 = vld [vmem:[#allocation16 + $0x550] sm:$0xff]
    %v1172 = vld [vmem:[#allocation16 + $0x558] sm:$0xf]
    %v1173 = vld [vmem:[#allocation16 + $0x55c] sm:$0xff]
    %v1174 = vld [vmem:[#allocation16 + $0x564] sm:$0xff]
    %v1175 = vld [vmem:[#allocation16 + $0x56c] sm:$0xff]
    %v1176 = vld [vmem:[#allocation16 + $0x574] sm:$0xf]
    %v1177 = vld [vmem:[#allocation16 + $0x578] sm:$0xff]
    %v1178 = vld [vmem:[#allocation16 + $0x580] sm:$0xff]
    %v1179 = vld [vmem:[#allocation16 + $0x588] sm:$0xff]
    %v1180 = vld [vmem:[#allocation16 + $0x590] sm:$0xf]
    %v1181 = vld [vmem:[#allocation16 + $0x594] sm:$0xff]
    %v1182 = vld [vmem:[#allocation16 + $0x59c] sm:$0xff]
    %v1183 = vld [vmem:[#allocation16 + $0x5a4] sm:$0xff]
    %v1184 = vld [vmem:[#allocation16 + $0x5ac] sm:$0xf]
    %v1185 = vld [vmem:[#allocation16 + $0x5b0] sm:$0xff]
    %v1186 = vld [vmem:[#allocation16 + $0x5b8] sm:$0xff]
    %v1187 = vld [vmem:[#allocation16 + $0x5c0] sm:$0xff]
    %v1188 = vld [vmem:[#allocation16 + $0x5c8] sm:$0xf]
    %v1189 = vld [vmem:[#allocation16 + $0x5cc] sm:$0xff]
    %v1190 = vld [vmem:[#allocation16 + $0x5d4] sm:$0xff]
    %v1191 = vld [vmem:[#allocation16 + $0x5dc] sm:$0xff]
    %v1192 = vld [vmem:[#allocation16 + $0x5e4] sm:$0xf]
    %v1193 = vld [vmem:[#allocation16 + $0x5e8] sm:$0xff]
    %v1194 = vld [vmem:[#allocation16 + $0x5f0] sm:$0xff]
    %v1195 = vld [vmem:[#allocation16 + $0x5f8] sm:$0xff]
    %v1196 = vld [vmem:[#allocation16 + $0x600] sm:$0xf]
    %v1197 = vld [vmem:[#allocation16 + $0x604] sm:$0xff]
    %v1198 = vld [vmem:[#allocation16 + $0x60c] sm:$0xff]
    %v1199 = vld [vmem:[#allocation16 + $0x614] sm:$0xff]
    %v1200 = vld [vmem:[#allocation16 + $0x61c] sm:$0xf]
    %v1201 = vld [vmem:[#allocation16 + $0x620] sm:$0xff]
    %v1202 = vld [vmem:[#allocation16 + $0x628] sm:$0xff]
    %v1203 = vld [vmem:[#allocation16 + $0x630] sm:$0xff]
    %v1204 = vld [vmem:[#allocation16 + $0x638] sm:$0xf]
    %v1205 = vld [vmem:[#allocation16 + $0x63c] sm:$0xff]
    %v1206 = vld [vmem:[#allocation16 + $0x644] sm:$0xff]
    %v1207 = vld [vmem:[#allocation16 + $0x64c] sm:$0xff]
    %v1208 = vld [vmem:[#allocation16 + $0x654] sm:$0xf]
    %v1209 = vld [vmem:[#allocation16 + $0x658] sm:$0xff]
    %v1210 = vld [vmem:[#allocation16 + $0x660] sm:$0xff]
    %v1211 = vld [vmem:[#allocation16 + $0x668] sm:$0xff]
    %v1212 = vld [vmem:[#allocation16 + $0x670] sm:$0xf]
    %v1213 = vld [vmem:[#allocation16 + $0x674] sm:$0xff]
    %v1214 = vld [vmem:[#allocation16 + $0x67c] sm:$0xff]
    %v1215 = vld [vmem:[#allocation16 + $0x684] sm:$0xff]
    %v1216 = vld [vmem:[#allocation16 + $0x68c] sm:$0xf]
    %v1217 = vld [vmem:[#allocation16 + $0x690] sm:$0xff]
    %v1218 = vld [vmem:[#allocation16 + $0x698] sm:$0xff]
    %v1219 = vld [vmem:[#allocation16 + $0x6a0] sm:$0xff]
    %v1220 = vld [vmem:[#allocation16 + $0x6a8] sm:$0xf]
    %v1221 = vld [vmem:[#allocation16 + $0x6ac] sm:$0xff]
    %v1222 = vld [vmem:[#allocation16 + $0x6b4] sm:$0xff]
    %v1223 = vld [vmem:[#allocation16 + $0x6bc] sm:$0xff]
    %v1224 = vld [vmem:[#allocation16 + $0x6c4] sm:$0xf]
    %v1225 = vld [vmem:[#allocation16 + $0x6c8] sm:$0xff]
    %v1226 = vld [vmem:[#allocation16 + $0x6d0] sm:$0xff]
    %v1227 = vld [vmem:[#allocation16 + $0x6d8] sm:$0xff]
    %v1228 = vld [vmem:[#allocation16 + $0x6e0] sm:$0xf]
    %v1229 = vld [vmem:[#allocation16 + $0x6e4] sm:$0xff]
    %v1230 = vld [vmem:[#allocation16 + $0x6ec] sm:$0xff]
    %v1231 = vld [vmem:[#allocation16 + $0x6f4] sm:$0xff]
    %v1232 = vld [vmem:[#allocation16 + $0x6fc] sm:$0xf]
    %v1233 = vld [vmem:[%s10] sm:$0xff]
    %v1235 = vperm.slane %v1233, 0
    %v1236 = vperm.slane %v1233, 1
    %v1237 = vperm.slane %v1233, 2
    %v1238 = vperm.slane %v1233, 3
    %v1239 = vperm.slane %v1233, 4
    %v1240 = vperm.slane %v1233, 5
    %v1241 = vperm.slane %v1233, 6
    %v1505 = vunpack.c.l.b16 %v977
    %v1506 = vunpack.c.h.b16 %v977
    %v1507 = vunpack.c.l.b16 %v978
    %v1508 = vunpack.c.h.b16 %v978
    %v1509 = vunpack.c.l.b16 %v979
    %v1510 = vunpack.c.h.b16 %v979
    %v1511 = vunpack.c.l.b16 %v980
    %v1512 = vunpack.c.l.b16 %v981
    %v1513 = vunpack.c.h.b16 %v981
    %v1514 = vunpack.c.l.b16 %v982
    %v1515 = vunpack.c.h.b16 %v982
    %v1516 = vunpack.c.l.b16 %v983
    %v1517 = vunpack.c.h.b16 %v983
    %v1518 = vunpack.c.l.b16 %v984
    %v1519 = vunpack.c.l.b16 %v985
    %v1520 = vunpack.c.h.b16 %v985
    %v1521 = vunpack.c.l.b16 %v986
    %v1522 = vunpack.c.h.b16 %v986
    %v1523 = vunpack.c.l.b16 %v987
    %v1524 = vunpack.c.h.b16 %v987
    %v1525 = vunpack.c.l.b16 %v988
    %v1526 = vunpack.c.l.b16 %v989
    %v1527 = vunpack.c.h.b16 %v989
    %v1528 = vunpack.c.l.b16 %v990
    %v1529 = vunpack.c.h.b16 %v990
    %v1530 = vunpack.c.l.b16 %v991
    %v1531 = vunpack.c.h.b16 %v991
    %v1532 = vunpack.c.l.b16 %v992
    %v1533 = vunpack.c.l.b16 %v993
    %v1534 = vunpack.c.h.b16 %v993
    %v1535 = vunpack.c.l.b16 %v994
    %v1536 = vunpack.c.h.b16 %v994
    %v1537 = vunpack.c.l.b16 %v995
    %v1538 = vunpack.c.h.b16 %v995
    %v1539 = vunpack.c.l.b16 %v996
    %v1540 = vunpack.c.l.b16 %v997
    %v1541 = vunpack.c.h.b16 %v997
    %v1542 = vunpack.c.l.b16 %v998
    %v1543 = vunpack.c.h.b16 %v998
    %v1544 = vunpack.c.l.b16 %v999
    %v1545 = vunpack.c.h.b16 %v999
    %v1546 = vunpack.c.l.b16 %v1000
    %v1547 = vunpack.c.l.b16 %v1001
    %v1548 = vunpack.c.h.b16 %v1001
    %v1549 = vunpack.c.l.b16 %v1002
    %v1550 = vunpack.c.h.b16 %v1002
    %v1551 = vunpack.c.l.b16 %v1003
    %v1552 = vunpack.c.h.b16 %v1003
    %v1553 = vunpack.c.l.b16 %v1004
    %v1554 = vunpack.c.l.b16 %v1005
    %v1555 = vunpack.c.h.b16 %v1005
    %v1556 = vunpack.c.l.b16 %v1006
    %v1557 = vunpack.c.h.b16 %v1006
    %v1558 = vunpack.c.l.b16 %v1007
    %v1559 = vunpack.c.h.b16 %v1007
    %v1560 = vunpack.c.l.b16 %v1008
    %v1561 = vunpack.c.l.b16 %v1009
    %v1562 = vunpack.c.h.b16 %v1009
    %v1563 = vunpack.c.l.b16 %v1010
    %v1564 = vunpack.c.h.b16 %v1010
    %v1565 = vunpack.c.l.b16 %v1011
    %v1566 = vunpack.c.h.b16 %v1011
    %v1567 = vunpack.c.l.b16 %v1012
    %v1568 = vunpack.c.l.b16 %v1013
    %v1569 = vunpack.c.h.b16 %v1013
    %v1570 = vunpack.c.l.b16 %v1014
    %v1571 = vunpack.c.h.b16 %v1014
    %v1572 = vunpack.c.l.b16 %v1015
    %v1573 = vunpack.c.h.b16 %v1015
    %v1574 = vunpack.c.l.b16 %v1016
    %v1575 = vunpack.c.l.b16 %v1017
    %v1576 = vunpack.c.h.b16 %v1017
    %v1577 = vunpack.c.l.b16 %v1018
    %v1578 = vunpack.c.h.b16 %v1018
    %v1579 = vunpack.c.l.b16 %v1019
    %v1580 = vunpack.c.h.b16 %v1019
    %v1581 = vunpack.c.l.b16 %v1020
    %v1582 = vunpack.c.l.b16 %v1021
    %v1583 = vunpack.c.h.b16 %v1021
    %v1584 = vunpack.c.l.b16 %v1022
    %v1585 = vunpack.c.h.b16 %v1022
    %v1586 = vunpack.c.l.b16 %v1023
    %v1587 = vunpack.c.h.b16 %v1023
    %v1588 = vunpack.c.l.b16 %v1024
    %v1589 = vunpack.c.l.b16 %v1025
    %v1590 = vunpack.c.h.b16 %v1025
    %v1591 = vunpack.c.l.b16 %v1026
    %v1592 = vunpack.c.h.b16 %v1026
    %v1593 = vunpack.c.l.b16 %v1027
    %v1594 = vunpack.c.h.b16 %v1027
    %v1595 = vunpack.c.l.b16 %v1028
    %v1596 = vunpack.c.l.b16 %v1029
    %v1597 = vunpack.c.h.b16 %v1029
    %v1598 = vunpack.c.l.b16 %v1030
    %v1599 = vunpack.c.h.b16 %v1030
    %v1600 = vunpack.c.l.b16 %v1031
    %v1601 = vunpack.c.h.b16 %v1031
    %v1602 = vunpack.c.l.b16 %v1032
    %v1603 = vunpack.c.l.b16 %v1033
    %v1604 = vunpack.c.h.b16 %v1033
    %v1605 = vunpack.c.l.b16 %v1034
    %v1606 = vunpack.c.h.b16 %v1034
    %v1607 = vunpack.c.l.b16 %v1035
    %v1608 = vunpack.c.h.b16 %v1035
    %v1609 = vunpack.c.l.b16 %v1036
    %v1610 = vunpack.c.l.b16 %v1037
    %v1611 = vunpack.c.h.b16 %v1037
    %v1612 = vunpack.c.l.b16 %v1038
    %v1613 = vunpack.c.h.b16 %v1038
    %v1614 = vunpack.c.l.b16 %v1039
    %v1615 = vunpack.c.h.b16 %v1039
    %v1616 = vunpack.c.l.b16 %v1040
    %v1617 = vunpack.c.l.b16 %v1041
    %v1618 = vunpack.c.h.b16 %v1041
    %v1619 = vunpack.c.l.b16 %v1042
    %v1620 = vunpack.c.h.b16 %v1042
    %v1621 = vunpack.c.l.b16 %v1043
    %v1622 = vunpack.c.h.b16 %v1043
    %v1623 = vunpack.c.l.b16 %v1044
    %v1624 = vunpack.c.l.b16 %v1045
    %v1625 = vunpack.c.h.b16 %v1045
    %v1626 = vunpack.c.l.b16 %v1046
    %v1627 = vunpack.c.h.b16 %v1046
    %v1628 = vunpack.c.l.b16 %v1047
    %v1629 = vunpack.c.h.b16 %v1047
    %v1630 = vunpack.c.l.b16 %v1048
    %v1631 = vunpack.c.l.b16 %v1049
    %v1632 = vunpack.c.h.b16 %v1049
    %v1633 = vunpack.c.l.b16 %v1050
    %v1634 = vunpack.c.h.b16 %v1050
    %v1635 = vunpack.c.l.b16 %v1051
    %v1636 = vunpack.c.h.b16 %v1051
    %v1637 = vunpack.c.l.b16 %v1052
    %v1638 = vunpack.c.l.b16 %v1053
    %v1639 = vunpack.c.h.b16 %v1053
    %v1640 = vunpack.c.l.b16 %v1054
    %v1641 = vunpack.c.h.b16 %v1054
    %v1642 = vunpack.c.l.b16 %v1055
    %v1643 = vunpack.c.h.b16 %v1055
    %v1644 = vunpack.c.l.b16 %v1056
    %v1645 = vunpack.c.l.b16 %v1057
    %v1646 = vunpack.c.h.b16 %v1057
    %v1647 = vunpack.c.l.b16 %v1058
    %v1648 = vunpack.c.h.b16 %v1058
    %v1649 = vunpack.c.l.b16 %v1059
    %v1650 = vunpack.c.h.b16 %v1059
    %v1651 = vunpack.c.l.b16 %v1060
    %v1652 = vunpack.c.l.b16 %v1061
    %v1653 = vunpack.c.h.b16 %v1061
    %v1654 = vunpack.c.l.b16 %v1062
    %v1655 = vunpack.c.h.b16 %v1062
    %v1656 = vunpack.c.l.b16 %v1063
    %v1657 = vunpack.c.h.b16 %v1063
    %v1658 = vunpack.c.l.b16 %v1064
    %v1659 = vunpack.c.l.b16 %v1065
    %v1660 = vunpack.c.h.b16 %v1065
    %v1661 = vunpack.c.l.b16 %v1066
    %v1662 = vunpack.c.h.b16 %v1066
    %v1663 = vunpack.c.l.b16 %v1067
    %v1664 = vunpack.c.h.b16 %v1067
    %v1665 = vunpack.c.l.b16 %v1068
    %v1666 = vunpack.c.l.b16 %v1069
    %v1667 = vunpack.c.h.b16 %v1069
    %v1668 = vunpack.c.l.b16 %v1070
    %v1669 = vunpack.c.h.b16 %v1070
    %v1670 = vunpack.c.l.b16 %v1071
    %v1671 = vunpack.c.h.b16 %v1071
    %v1672 = vunpack.c.l.b16 %v1072
    %v1673 = vunpack.c.l.b16 %v1073
    %v1674 = vunpack.c.h.b16 %v1073
    %v1675 = vunpack.c.l.b16 %v1074
    %v1676 = vunpack.c.h.b16 %v1074
    %v1677 = vunpack.c.l.b16 %v1075
    %v1678 = vunpack.c.h.b16 %v1075
    %v1679 = vunpack.c.l.b16 %v1076
    %v1680 = vunpack.c.l.b16 %v1077
    %v1681 = vunpack.c.h.b16 %v1077
    %v1682 = vunpack.c.l.b16 %v1078
    %v1683 = vunpack.c.h.b16 %v1078
    %v1684 = vunpack.c.l.b16 %v1079
    %v1685 = vunpack.c.h.b16 %v1079
    %v1686 = vunpack.c.l.b16 %v1080
    %v1687 = vunpack.c.l.b16 %v1081
    %v1688 = vunpack.c.h.b16 %v1081
    %v1689 = vunpack.c.l.b16 %v1082
    %v1690 = vunpack.c.h.b16 %v1082
    %v1691 = vunpack.c.l.b16 %v1083
    %v1692 = vunpack.c.h.b16 %v1083
    %v1693 = vunpack.c.l.b16 %v1084
    %v1694 = vunpack.c.l.b16 %v1085
    %v1695 = vunpack.c.h.b16 %v1085
    %v1696 = vunpack.c.l.b16 %v1086
    %v1697 = vunpack.c.h.b16 %v1086
    %v1698 = vunpack.c.l.b16 %v1087
    %v1699 = vunpack.c.h.b16 %v1087
    %v1700 = vunpack.c.l.b16 %v1088
    %v1701 = vunpack.c.l.b16 %v1089
    %v1702 = vunpack.c.h.b16 %v1089
    %v1703 = vunpack.c.l.b16 %v1090
    %v1704 = vunpack.c.h.b16 %v1090
    %v1705 = vunpack.c.l.b16 %v1091
    %v1706 = vunpack.c.h.b16 %v1091
    %v1707 = vunpack.c.l.b16 %v1092
    %v1708 = vunpack.c.l.b16 %v1093
    %v1709 = vunpack.c.h.b16 %v1093
    %v1710 = vunpack.c.l.b16 %v1094
    %v1711 = vunpack.c.h.b16 %v1094
    %v1712 = vunpack.c.l.b16 %v1095
    %v1713 = vunpack.c.h.b16 %v1095
    %v1714 = vunpack.c.l.b16 %v1096
    %v1715 = vunpack.c.l.b16 %v1097
    %v1716 = vunpack.c.h.b16 %v1097
    %v1717 = vunpack.c.l.b16 %v1098
    %v1718 = vunpack.c.h.b16 %v1098
    %v1719 = vunpack.c.l.b16 %v1099
    %v1720 = vunpack.c.h.b16 %v1099
    %v1721 = vunpack.c.l.b16 %v1100
    %v1722 = vunpack.c.l.b16 %v1101
    %v1723 = vunpack.c.h.b16 %v1101
    %v1724 = vunpack.c.l.b16 %v1102
    %v1725 = vunpack.c.h.b16 %v1102
    %v1726 = vunpack.c.l.b16 %v1103
    %v1727 = vunpack.c.h.b16 %v1103
    %v1728 = vunpack.c.l.b16 %v1104
    %v1729 = vunpack.c.l.b16 %v1105
    %v1730 = vunpack.c.h.b16 %v1105
    %v1731 = vunpack.c.l.b16 %v1106
    %v1732 = vunpack.c.h.b16 %v1106
    %v1733 = vunpack.c.l.b16 %v1107
    %v1734 = vunpack.c.h.b16 %v1107
    %v1735 = vunpack.c.l.b16 %v1108
    %v1736 = vunpack.c.l.b16 %v1109
    %v1737 = vunpack.c.h.b16 %v1109
    %v1738 = vunpack.c.l.b16 %v1110
    %v1739 = vunpack.c.h.b16 %v1110
    %v1740 = vunpack.c.l.b16 %v1111
    %v1741 = vunpack.c.h.b16 %v1111
    %v1742 = vunpack.c.l.b16 %v1112
    %v1743 = vunpack.c.l.b16 %v1113
    %v1744 = vunpack.c.h.b16 %v1113
    %v1745 = vunpack.c.l.b16 %v1114
    %v1746 = vunpack.c.h.b16 %v1114
    %v1747 = vunpack.c.l.b16 %v1115
    %v1748 = vunpack.c.h.b16 %v1115
    %v1749 = vunpack.c.l.b16 %v1116
    %v1750 = vunpack.c.l.b16 %v1117
    %v1751 = vunpack.c.h.b16 %v1117
    %v1752 = vunpack.c.l.b16 %v1118
    %v1753 = vunpack.c.h.b16 %v1118
    %v1754 = vunpack.c.l.b16 %v1119
    %v1755 = vunpack.c.h.b16 %v1119
    %v1756 = vunpack.c.l.b16 %v1120
    %v1757 = vunpack.c.l.b16 %v1121
    %v1758 = vunpack.c.h.b16 %v1121
    %v1759 = vunpack.c.l.b16 %v1122
    %v1760 = vunpack.c.h.b16 %v1122
    %v1761 = vunpack.c.l.b16 %v1123
    %v1762 = vunpack.c.h.b16 %v1123
    %v1763 = vunpack.c.l.b16 %v1124
    %v1764 = vunpack.c.l.b16 %v1125
    %v1765 = vunpack.c.h.b16 %v1125
    %v1766 = vunpack.c.l.b16 %v1126
    %v1767 = vunpack.c.h.b16 %v1126
    %v1768 = vunpack.c.l.b16 %v1127
    %v1769 = vunpack.c.h.b16 %v1127
    %v1770 = vunpack.c.l.b16 %v1128
    %v1771 = vunpack.c.l.b16 %v1129
    %v1772 = vunpack.c.h.b16 %v1129
    %v1773 = vunpack.c.l.b16 %v1130
    %v1774 = vunpack.c.h.b16 %v1130
    %v1775 = vunpack.c.l.b16 %v1131
    %v1776 = vunpack.c.h.b16 %v1131
    %v1777 = vunpack.c.l.b16 %v1132
    %v1778 = vunpack.c.l.b16 %v1133
    %v1779 = vunpack.c.h.b16 %v1133
    %v1780 = vunpack.c.l.b16 %v1134
    %v1781 = vunpack.c.h.b16 %v1134
    %v1782 = vunpack.c.l.b16 %v1135
    %v1783 = vunpack.c.h.b16 %v1135
    %v1784 = vunpack.c.l.b16 %v1136
    %v1785 = vunpack.c.l.b16 %v1137
    %v1786 = vunpack.c.h.b16 %v1137
    %v1787 = vunpack.c.l.b16 %v1138
    %v1788 = vunpack.c.h.b16 %v1138
    %v1789 = vunpack.c.l.b16 %v1139
    %v1790 = vunpack.c.h.b16 %v1139
    %v1791 = vunpack.c.l.b16 %v1140
    %v1792 = vunpack.c.l.b16 %v1141
    %v1793 = vunpack.c.h.b16 %v1141
    %v1794 = vunpack.c.l.b16 %v1142
    %v1795 = vunpack.c.h.b16 %v1142
    %v1796 = vunpack.c.l.b16 %v1143
    %v1797 = vunpack.c.h.b16 %v1143
    %v1798 = vunpack.c.l.b16 %v1144
    %v1799 = vunpack.c.l.b16 %v1145
    %v1800 = vunpack.c.h.b16 %v1145
    %v1801 = vunpack.c.l.b16 %v1146
    %v1802 = vunpack.c.h.b16 %v1146
    %v1803 = vunpack.c.l.b16 %v1147
    %v1804 = vunpack.c.h.b16 %v1147
    %v1805 = vunpack.c.l.b16 %v1148
    %v1806 = vunpack.c.l.b16 %v1149
    %v1807 = vunpack.c.h.b16 %v1149
    %v1808 = vunpack.c.l.b16 %v1150
    %v1809 = vunpack.c.h.b16 %v1150
    %v1810 = vunpack.c.l.b16 %v1151
    %v1811 = vunpack.c.h.b16 %v1151
    %v1812 = vunpack.c.l.b16 %v1152
    %v1813 = vunpack.c.l.b16 %v1153
    %v1814 = vunpack.c.h.b16 %v1153
    %v1815 = vunpack.c.l.b16 %v1154
    %v1816 = vunpack.c.h.b16 %v1154
    %v1817 = vunpack.c.l.b16 %v1155
    %v1818 = vunpack.c.h.b16 %v1155
    %v1819 = vunpack.c.l.b16 %v1156
    %v1820 = vunpack.c.l.b16 %v1157
    %v1821 = vunpack.c.h.b16 %v1157
    %v1822 = vunpack.c.l.b16 %v1158
    %v1823 = vunpack.c.h.b16 %v1158
    %v1824 = vunpack.c.l.b16 %v1159
    %v1825 = vunpack.c.h.b16 %v1159
    %v1826 = vunpack.c.l.b16 %v1160
    %v1827 = vunpack.c.l.b16 %v1161
    %v1828 = vunpack.c.h.b16 %v1161
    %v1829 = vunpack.c.l.b16 %v1162
    %v1830 = vunpack.c.h.b16 %v1162
    %v1831 = vunpack.c.l.b16 %v1163
    %v1832 = vunpack.c.h.b16 %v1163
    %v1833 = vunpack.c.l.b16 %v1164
    %v1834 = vunpack.c.l.b16 %v1165
    %v1835 = vunpack.c.h.b16 %v1165
    %v1836 = vunpack.c.l.b16 %v1166
    %v1837 = vunpack.c.h.b16 %v1166
    %v1838 = vunpack.c.l.b16 %v1167
    %v1839 = vunpack.c.h.b16 %v1167
    %v1840 = vunpack.c.l.b16 %v1168
    %v1841 = vunpack.c.l.b16 %v1169
    %v1842 = vunpack.c.h.b16 %v1169
    %v1843 = vunpack.c.l.b16 %v1170
    %v1844 = vunpack.c.h.b16 %v1170
    %v1845 = vunpack.c.l.b16 %v1171
    %v1846 = vunpack.c.h.b16 %v1171
    %v1847 = vunpack.c.l.b16 %v1172
    %v1848 = vunpack.c.l.b16 %v1173
    %v1849 = vunpack.c.h.b16 %v1173
    %v1850 = vunpack.c.l.b16 %v1174
    %v1851 = vunpack.c.h.b16 %v1174
    %v1852 = vunpack.c.l.b16 %v1175
    %v1853 = vunpack.c.h.b16 %v1175
    %v1854 = vunpack.c.l.b16 %v1176
    %v1855 = vunpack.c.l.b16 %v1177
    %v1856 = vunpack.c.h.b16 %v1177
    %v1857 = vunpack.c.l.b16 %v1178
    %v1858 = vunpack.c.h.b16 %v1178
    %v1859 = vunpack.c.l.b16 %v1179
    %v1860 = vunpack.c.h.b16 %v1179
    %v1861 = vunpack.c.l.b16 %v1180
    %v1862 = vunpack.c.l.b16 %v1181
    %v1863 = vunpack.c.h.b16 %v1181
    %v1864 = vunpack.c.l.b16 %v1182
    %v1865 = vunpack.c.h.b16 %v1182
    %v1866 = vunpack.c.l.b16 %v1183
    %v1867 = vunpack.c.h.b16 %v1183
    %v1868 = vunpack.c.l.b16 %v1184
    %v1869 = vunpack.c.l.b16 %v1185
    %v1870 = vunpack.c.h.b16 %v1185
    %v1871 = vunpack.c.l.b16 %v1186
    %v1872 = vunpack.c.h.b16 %v1186
    %v1873 = vunpack.c.l.b16 %v1187
    %v1874 = vunpack.c.h.b16 %v1187
    %v1875 = vunpack.c.l.b16 %v1188
    %v1876 = vunpack.c.l.b16 %v1189
    %v1877 = vunpack.c.h.b16 %v1189
    %v1878 = vunpack.c.l.b16 %v1190
    %v1879 = vunpack.c.h.b16 %v1190
    %v1880 = vunpack.c.l.b16 %v1191
    %v1881 = vunpack.c.h.b16 %v1191
    %v1882 = vunpack.c.l.b16 %v1192
    %v1883 = vunpack.c.l.b16 %v1193
    %v1884 = vunpack.c.h.b16 %v1193
    %v1885 = vunpack.c.l.b16 %v1194
    %v1886 = vunpack.c.h.b16 %v1194
    %v1887 = vunpack.c.l.b16 %v1195
    %v1888 = vunpack.c.h.b16 %v1195
    %v1889 = vunpack.c.l.b16 %v1196
    %v1890 = vunpack.c.l.b16 %v1197
    %v1891 = vunpack.c.h.b16 %v1197
    %v1892 = vunpack.c.l.b16 %v1198
    %v1893 = vunpack.c.h.b16 %v1198
    %v1894 = vunpack.c.l.b16 %v1199
    %v1895 = vunpack.c.h.b16 %v1199
    %v1896 = vunpack.c.l.b16 %v1200
    %v1897 = vunpack.c.l.b16 %v1201
    %v1898 = vunpack.c.h.b16 %v1201
    %v1899 = vunpack.c.l.b16 %v1202
    %v1900 = vunpack.c.h.b16 %v1202
    %v1901 = vunpack.c.l.b16 %v1203
    %v1902 = vunpack.c.h.b16 %v1203
    %v1903 = vunpack.c.l.b16 %v1204
    %v1904 = vunpack.c.l.b16 %v1205
    %v1905 = vunpack.c.h.b16 %v1205
    %v1906 = vunpack.c.l.b16 %v1206
    %v1907 = vunpack.c.h.b16 %v1206
    %v1908 = vunpack.c.l.b16 %v1207
    %v1909 = vunpack.c.h.b16 %v1207
    %v1910 = vunpack.c.l.b16 %v1208
    %v1911 = vunpack.c.l.b16 %v1209
    %v1912 = vunpack.c.h.b16 %v1209
    %v1913 = vunpack.c.l.b16 %v1210
    %v1914 = vunpack.c.h.b16 %v1210
    %v1915 = vunpack.c.l.b16 %v1211
    %v1916 = vunpack.c.h.b16 %v1211
    %v1917 = vunpack.c.l.b16 %v1212
    %v1918 = vunpack.c.l.b16 %v1213
    %v1919 = vunpack.c.h.b16 %v1213
    %v1920 = vunpack.c.l.b16 %v1214
    %v1921 = vunpack.c.h.b16 %v1214
    %v1922 = vunpack.c.l.b16 %v1215
    %v1923 = vunpack.c.h.b16 %v1215
    %v1924 = vunpack.c.l.b16 %v1216
    %v1925 = vunpack.c.l.b16 %v1217
    %v1926 = vunpack.c.h.b16 %v1217
    %v1927 = vunpack.c.l.b16 %v1218
    %v1928 = vunpack.c.h.b16 %v1218
    %v1929 = vunpack.c.l.b16 %v1219
    %v1930 = vunpack.c.h.b16 %v1219
    %v1931 = vunpack.c.l.b16 %v1220
    %v1932 = vunpack.c.l.b16 %v1221
    %v1933 = vunpack.c.h.b16 %v1221
    %v1934 = vunpack.c.l.b16 %v1222
    %v1935 = vunpack.c.h.b16 %v1222
    %v1936 = vunpack.c.l.b16 %v1223
    %v1937 = vunpack.c.h.b16 %v1223
    %v1938 = vunpack.c.l.b16 %v1224
    %v1939 = vunpack.c.l.b16 %v1225
    %v1940 = vunpack.c.h.b16 %v1225
    %v1941 = vunpack.c.l.b16 %v1226
    %v1942 = vunpack.c.h.b16 %v1226
    %v1943 = vunpack.c.l.b16 %v1227
    %v1944 = vunpack.c.h.b16 %v1227
    %v1945 = vunpack.c.l.b16 %v1228
    %v1946 = vunpack.c.l.b16 %v1229
    %v1947 = vunpack.c.h.b16 %v1229
    %v1948 = vunpack.c.l.b16 %v1230
    %v1949 = vunpack.c.h.b16 %v1230
    %v1950 = vunpack.c.l.b16 %v1231
    %v1951 = vunpack.c.h.b16 %v1231
    %v1952 = vunpack.c.l.b16 %v1232
    %v1953 = vpack.c.b16 %v1512, %v1505
    %v1954 = vpack.c.b16 %v1513, %v1506
    %v1955 = vpack.c.b16 %v1514, %v1507
    %v1956 = vpack.c.b16 %v1515, %v1508
    %v1957 = vpack.c.b16 %v1516, %v1509
    %v1958 = vpack.c.b16 %v1517, %v1510
    %v1959 = vpack.c.b16 %v1518, %v1511
    %v1960 = vpack.c.b16 %v1526, %v1519
    %v1961 = vpack.c.b16 %v1527, %v1520
    %v1962 = vpack.c.b16 %v1528, %v1521
    %v1963 = vpack.c.b16 %v1529, %v1522
    %v1964 = vpack.c.b16 %v1530, %v1523
    %v1965 = vpack.c.b16 %v1531, %v1524
    %v1966 = vpack.c.b16 %v1532, %v1525
    %v1967 = vpack.c.b16 %v1540, %v1533
    %v1968 = vpack.c.b16 %v1541, %v1534
    %v1969 = vpack.c.b16 %v1542, %v1535
    %v1970 = vpack.c.b16 %v1543, %v1536
    %v1971 = vpack.c.b16 %v1544, %v1537
    %v1972 = vpack.c.b16 %v1545, %v1538
    %v1973 = vpack.c.b16 %v1546, %v1539
    %v1974 = vpack.c.b16 %v1554, %v1547
    %v1975 = vpack.c.b16 %v1555, %v1548
    %v1976 = vpack.c.b16 %v1556, %v1549
    %v1977 = vpack.c.b16 %v1557, %v1550
    %v1978 = vpack.c.b16 %v1558, %v1551
    %v1979 = vpack.c.b16 %v1559, %v1552
    %v1980 = vpack.c.b16 %v1560, %v1553
    %v1981 = vpack.c.b16 %v1568, %v1561
    %v1982 = vpack.c.b16 %v1569, %v1562
    %v1983 = vpack.c.b16 %v1570, %v1563
    %v1984 = vpack.c.b16 %v1571, %v1564
    %v1985 = vpack.c.b16 %v1572, %v1565
    %v1986 = vpack.c.b16 %v1573, %v1566
    %v1987 = vpack.c.b16 %v1574, %v1567
    %v1988 = vpack.c.b16 %v1582, %v1575
    %v1989 = vpack.c.b16 %v1583, %v1576
    %v1990 = vpack.c.b16 %v1584, %v1577
    %v1991 = vpack.c.b16 %v1585, %v1578
    %v1992 = vpack.c.b16 %v1586, %v1579
    %v1993 = vpack.c.b16 %v1587, %v1580
    %v1994 = vpack.c.b16 %v1588, %v1581
    %v1995 = vpack.c.b16 %v1596, %v1589
    %v1996 = vpack.c.b16 %v1597, %v1590
    %v1997 = vpack.c.b16 %v1598, %v1591
    %v1998 = vpack.c.b16 %v1599, %v1592
    %v1999 = vpack.c.b16 %v1600, %v1593
    %v2000 = vpack.c.b16 %v1601, %v1594
    %v2001 = vpack.c.b16 %v1602, %v1595
    %v2002 = vpack.c.b16 %v1610, %v1603
    %v2003 = vpack.c.b16 %v1611, %v1604
    %v2004 = vpack.c.b16 %v1612, %v1605
    %v2005 = vpack.c.b16 %v1613, %v1606
    %v2006 = vpack.c.b16 %v1614, %v1607
    %v2007 = vpack.c.b16 %v1615, %v1608
    %v2008 = vpack.c.b16 %v1616, %v1609
    %v2009 = vpack.c.b16 %v1624, %v1617
    %v2010 = vpack.c.b16 %v1625, %v1618
    %v2011 = vpack.c.b16 %v1626, %v1619
    %v2012 = vpack.c.b16 %v1627, %v1620
    %v2013 = vpack.c.b16 %v1628, %v1621
    %v2014 = vpack.c.b16 %v1629, %v1622
    %v2015 = vpack.c.b16 %v1630, %v1623
    %v2016 = vpack.c.b16 %v1638, %v1631
    %v2017 = vpack.c.b16 %v1639, %v1632
    %v2018 = vpack.c.b16 %v1640, %v1633
    %v2019 = vpack.c.b16 %v1641, %v1634
    %v2020 = vpack.c.b16 %v1642, %v1635
    %v2021 = vpack.c.b16 %v1643, %v1636
    %v2022 = vpack.c.b16 %v1644, %v1637
    %v2023 = vpack.c.b16 %v1652, %v1645
    %v2024 = vpack.c.b16 %v1653, %v1646
    %v2025 = vpack.c.b16 %v1654, %v1647
    %v2026 = vpack.c.b16 %v1655, %v1648
    %v2027 = vpack.c.b16 %v1656, %v1649
    %v2028 = vpack.c.b16 %v1657, %v1650
    %v2029 = vpack.c.b16 %v1658, %v1651
    %v2030 = vpack.c.b16 %v1666, %v1659
    %v2031 = vpack.c.b16 %v1667, %v1660
    %v2032 = vpack.c.b16 %v1668, %v1661
    %v2033 = vpack.c.b16 %v1669, %v1662
    %v2034 = vpack.c.b16 %v1670, %v1663
    %v2035 = vpack.c.b16 %v1671, %v1664
    %v2036 = vpack.c.b16 %v1672, %v1665
    %v2037 = vpack.c.b16 %v1680, %v1673
    %v2038 = vpack.c.b16 %v1681, %v1674
    %v2039 = vpack.c.b16 %v1682, %v1675
    %v2040 = vpack.c.b16 %v1683, %v1676
    %v2041 = vpack.c.b16 %v1684, %v1677
    %v2042 = vpack.c.b16 %v1685, %v1678
    %v2043 = vpack.c.b16 %v1686, %v1679
    %v2044 = vpack.c.b16 %v1694, %v1687
    %v2045 = vpack.c.b16 %v1695, %v1688
    %v2046 = vpack.c.b16 %v1696, %v1689
    %v2047 = vpack.c.b16 %v1697, %v1690
    %v2048 = vpack.c.b16 %v1698, %v1691
    %v2049 = vpack.c.b16 %v1699, %v1692
    %v2050 = vpack.c.b16 %v1700, %v1693
    %v2051 = vpack.c.b16 %v1708, %v1701
    %v2052 = vpack.c.b16 %v1709, %v1702
    %v2053 = vpack.c.b16 %v1710, %v1703
    %v2054 = vpack.c.b16 %v1711, %v1704
    %v2055 = vpack.c.b16 %v1712, %v1705
    %v2056 = vpack.c.b16 %v1713, %v1706
    %v2057 = vpack.c.b16 %v1714, %v1707
    %v2058 = vpack.c.b16 %v1722, %v1715
    %v2059 = vpack.c.b16 %v1723, %v1716
    %v2060 = vpack.c.b16 %v1724, %v1717
    %v2061 = vpack.c.b16 %v1725, %v1718
    %v2062 = vpack.c.b16 %v1726, %v1719
    %v2063 = vpack.c.b16 %v1727, %v1720
    %v2064 = vpack.c.b16 %v1728, %v1721
    %v2065 = vpack.c.b16 %v1736, %v1729
    %v2066 = vpack.c.b16 %v1737, %v1730
    %v2067 = vpack.c.b16 %v1738, %v1731
    %v2068 = vpack.c.b16 %v1739, %v1732
    %v2069 = vpack.c.b16 %v1740, %v1733
    %v2070 = vpack.c.b16 %v1741, %v1734
    %v2071 = vpack.c.b16 %v1742, %v1735
    %v2072 = vpack.c.b16 %v1750, %v1743
    %v2073 = vpack.c.b16 %v1751, %v1744
    %v2074 = vpack.c.b16 %v1752, %v1745
    %v2075 = vpack.c.b16 %v1753, %v1746
    %v2076 = vpack.c.b16 %v1754, %v1747
    %v2077 = vpack.c.b16 %v1755, %v1748
    %v2078 = vpack.c.b16 %v1756, %v1749
    %v2079 = vpack.c.b16 %v1764, %v1757
    %v2080 = vpack.c.b16 %v1765, %v1758
    %v2081 = vpack.c.b16 %v1766, %v1759
    %v2082 = vpack.c.b16 %v1767, %v1760
    %v2083 = vpack.c.b16 %v1768, %v1761
    %v2084 = vpack.c.b16 %v1769, %v1762
    %v2085 = vpack.c.b16 %v1770, %v1763
    %v2086 = vpack.c.b16 %v1778, %v1771
    %v2087 = vpack.c.b16 %v1779, %v1772
    %v2088 = vpack.c.b16 %v1780, %v1773
    %v2089 = vpack.c.b16 %v1781, %v1774
    %v2090 = vpack.c.b16 %v1782, %v1775
    %v2091 = vpack.c.b16 %v1783, %v1776
    %v2092 = vpack.c.b16 %v1784, %v1777
    %v2093 = vpack.c.b16 %v1792, %v1785
    %v2094 = vpack.c.b16 %v1793, %v1786
    %v2095 = vpack.c.b16 %v1794, %v1787
    %v2096 = vpack.c.b16 %v1795, %v1788
    %v2097 = vpack.c.b16 %v1796, %v1789
    %v2098 = vpack.c.b16 %v1797, %v1790
    %v2099 = vpack.c.b16 %v1798, %v1791
    %v2100 = vpack.c.b16 %v1806, %v1799
    %v2101 = vpack.c.b16 %v1807, %v1800
    %v2102 = vpack.c.b16 %v1808, %v1801
    %v2103 = vpack.c.b16 %v1809, %v1802
    %v2104 = vpack.c.b16 %v1810, %v1803
    %v2105 = vpack.c.b16 %v1811, %v1804
    %v2106 = vpack.c.b16 %v1812, %v1805
    %v2107 = vpack.c.b16 %v1820, %v1813
    %v2108 = vpack.c.b16 %v1821, %v1814
    %v2109 = vpack.c.b16 %v1822, %v1815
    %v2110 = vpack.c.b16 %v1823, %v1816
    %v2111 = vpack.c.b16 %v1824, %v1817
    %v2112 = vpack.c.b16 %v1825, %v1818
    %v2113 = vpack.c.b16 %v1826, %v1819
    %v2114 = vpack.c.b16 %v1834, %v1827
    %v2115 = vpack.c.b16 %v1835, %v1828
    %v2116 = vpack.c.b16 %v1836, %v1829
    %v2117 = vpack.c.b16 %v1837, %v1830
    %v2118 = vpack.c.b16 %v1838, %v1831
    %v2119 = vpack.c.b16 %v1839, %v1832
    %v2120 = vpack.c.b16 %v1840, %v1833
    %v2121 = vpack.c.b16 %v1848, %v1841
    %v2122 = vpack.c.b16 %v1849, %v1842
    %v2123 = vpack.c.b16 %v1850, %v1843
    %v2124 = vpack.c.b16 %v1851, %v1844
    %v2125 = vpack.c.b16 %v1852, %v1845
    %v2126 = vpack.c.b16 %v1853, %v1846
    %v2127 = vpack.c.b16 %v1854, %v1847
    %v2128 = vpack.c.b16 %v1862, %v1855
    %v2129 = vpack.c.b16 %v1863, %v1856
    %v2130 = vpack.c.b16 %v1864, %v1857
    %v2131 = vpack.c.b16 %v1865, %v1858
    %v2132 = vpack.c.b16 %v1866, %v1859
    %v2133 = vpack.c.b16 %v1867, %v1860
    %v2134 = vpack.c.b16 %v1868, %v1861
    %v2135 = vpack.c.b16 %v1876, %v1869
    %v2136 = vpack.c.b16 %v1877, %v1870
    %v2137 = vpack.c.b16 %v1878, %v1871
    %v2138 = vpack.c.b16 %v1879, %v1872
    %v2139 = vpack.c.b16 %v1880, %v1873
    %v2140 = vpack.c.b16 %v1881, %v1874
    %v2141 = vpack.c.b16 %v1882, %v1875
    %v2142 = vpack.c.b16 %v1890, %v1883
    %v2143 = vpack.c.b16 %v1891, %v1884
    %v2144 = vpack.c.b16 %v1892, %v1885
    %v2145 = vpack.c.b16 %v1893, %v1886
    %v2146 = vpack.c.b16 %v1894, %v1887
    %v2147 = vpack.c.b16 %v1895, %v1888
    %v2148 = vpack.c.b16 %v1896, %v1889
    %v2149 = vpack.c.b16 %v1904, %v1897
    %v2150 = vpack.c.b16 %v1905, %v1898
    %v2151 = vpack.c.b16 %v1906, %v1899
    %v2152 = vpack.c.b16 %v1907, %v1900
    %v2153 = vpack.c.b16 %v1908, %v1901
    %v2154 = vpack.c.b16 %v1909, %v1902
    %v2155 = vpack.c.b16 %v1910, %v1903
    %v2156 = vpack.c.b16 %v1918, %v1911
    %v2157 = vpack.c.b16 %v1919, %v1912
    %v2158 = vpack.c.b16 %v1920, %v1913
    %v2159 = vpack.c.b16 %v1921, %v1914
    %v2160 = vpack.c.b16 %v1922, %v1915
    %v2161 = vpack.c.b16 %v1923, %v1916
    %v2162 = vpack.c.b16 %v1924, %v1917
    %v2163 = vpack.c.b16 %v1932, %v1925
    %v2164 = vpack.c.b16 %v1933, %v1926
    %v2165 = vpack.c.b16 %v1934, %v1927
    %v2166 = vpack.c.b16 %v1935, %v1928
    %v2167 = vpack.c.b16 %v1936, %v1929
    %v2168 = vpack.c.b16 %v1937, %v1930
    %v2169 = vpack.c.b16 %v1938, %v1931
    %v2170 = vpack.c.b16 %v1946, %v1939
    %v2171 = vpack.c.b16 %v1947, %v1940
    %v2172 = vpack.c.b16 %v1948, %v1941
    %v2173 = vpack.c.b16 %v1949, %v1942
    %v2174 = vpack.c.b16 %v1950, %v1943
    %v2175 = vpack.c.b16 %v1951, %v1944
    %v2176 = vpack.c.b16 %v1952, %v1945
    %2401 = vmatpush.bf16.msra.mxu0 %v2002
    %2402 = vmatpush.bf16.msra.mxu0 %v1995
    %2403 = vmatpush.bf16.msra.mxu0 %v1988
    %2404 = vmatpush.bf16.msra.mxu0 %v1981
    %2405 = vmatpush.bf16.msra.mxu0 %v1974
    %2406 = vmatpush.bf16.msra.mxu0 %v1967
    %2407 = vmatpush.bf16.msra.mxu0 %v1960
    %2408 = vmatpush.bf16.msra.mxu0 %v1953
    %2409 = vmatmul.bf16.gmra.mxu0 %v973
    %v2410 = vpop.f32.mrf.mxu0
    %v2411 = vadd.f32 %v1235, %v2410
    %v2412 = vpop.f32.mrf.mxu0
    %2413 = vdwg.mxu0
    %2414 = vmatpush.bf16.msra.mxu0 %v2058
    %2415 = vmatpush.bf16.msra.mxu0 %v2051
    %2416 = vmatpush.bf16.msra.mxu0 %v2044
    %2417 = vmatpush.bf16.msra.mxu0 %v2037
    %2418 = vmatpush.bf16.msra.mxu0 %v2030
    %2419 = vmatpush.bf16.msra.mxu0 %v2023
    %2420 = vmatpush.bf16.msra.mxu0 %v2016
    %2421 = vmatpush.bf16.msra.mxu0 %v2009
    %2422 = vmatmul.bf16.gmra.mxu0 %v974
    %v2423 = vpop.f32.mrf.mxu0
    %v2424 = vadd.f32 %v2411, %v2423
    %v2425 = vpop.f32.mrf.mxu0
    %2426 = vdwg.mxu0
    %2427 = vmatpush.bf16.msra.mxu0 %v2114
    %2428 = vmatpush.bf16.msra.mxu0 %v2107
    %2429 = vmatpush.bf16.msra.mxu0 %v2100
    %2430 = vmatpush.bf16.msra.mxu0 %v2093
    %2431 = vmatpush.bf16.msra.mxu0 %v2086
    %2432 = vmatpush.bf16.msra.mxu0 %v2079
    %2433 = vmatpush.bf16.msra.mxu0 %v2072
    %2434 = vmatpush.bf16.msra.mxu0 %v2065
    %2435 = vmatmul.bf16.gmra.mxu0 %v975
    %v2436 = vpop.f32.mrf.mxu0
    %v2437 = vadd.f32 %v2424, %v2436
    %v2438 = vpop.f32.mrf.mxu0
    %2439 = vdwg.mxu0
    %2440 = vmatpush.bf16.msra.mxu0 %v2170
    %2441 = vmatpush.bf16.msra.mxu0 %v2163
    %2442 = vmatpush.bf16.msra.mxu0 %v2156
    %2443 = vmatpush.bf16.msra.mxu0 %v2149
    %2444 = vmatpush.bf16.msra.mxu0 %v2142
    %2445 = vmatpush.bf16.msra.mxu0 %v2135
    %2446 = vmatpush.bf16.msra.mxu0 %v2128
    %2447 = vmatpush.bf16.msra.mxu0 %v2121
    %2448 = vmatmul.bf16.gmra.mxu0 %v976
    %v2449 = vpop.f32.mrf.mxu0
    %v2450 = vadd.f32 %v2437, %v2449
    %v2451 = vpop.f32.mrf.mxu0
    %2452 = vdwg.mxu0
    %2453 = vmatpush.bf16.msra.mxu0 %v2003
    %2454 = vmatpush.bf16.msra.mxu0 %v1996
    %2455 = vmatpush.bf16.msra.mxu0 %v1989
    %2456 = vmatpush.bf16.msra.mxu0 %v1982
    %2457 = vmatpush.bf16.msra.mxu0 %v1975
    %2458 = vmatpush.bf16.msra.mxu0 %v1968
    %2459 = vmatpush.bf16.msra.mxu0 %v1961
    %2460 = vmatpush.bf16.msra.mxu0 %v1954
    %2461 = vmatmul.bf16.gmra.mxu0 %v973
    %v2462 = vpop.f32.mrf.mxu0
    %v2463 = vadd.f32 %v1236, %v2462
    %v2464 = vpop.f32.mrf.mxu0
    %2465 = vdwg.mxu0
    %2466 = vmatpush.bf16.msra.mxu0 %v2059
    %2467 = vmatpush.bf16.msra.mxu0 %v2052
    %2468 = vmatpush.bf16.msra.mxu0 %v2045
    %2469 = vmatpush.bf16.msra.mxu0 %v2038
    %2470 = vmatpush.bf16.msra.mxu0 %v2031
    %2471 = vmatpush.bf16.msra.mxu0 %v2024
    %2472 = vmatpush.bf16.msra.mxu0 %v2017
    %2473 = vmatpush.bf16.msra.mxu0 %v2010
    %2474 = vmatmul.bf16.gmra.mxu0 %v974
    %v2475 = vpop.f32.mrf.mxu0
    %v2476 = vadd.f32 %v2463, %v2475
    %v2477 = vpop.f32.mrf.mxu0
    %2478 = vdwg.mxu0
    %2479 = vmatpush.bf16.msra.mxu0 %v2115
    %2480 = vmatpush.bf16.msra.mxu0 %v2108
    %2481 = vmatpush.bf16.msra.mxu0 %v2101
    %2482 = vmatpush.bf16.msra.mxu0 %v2094
    %2483 = vmatpush.bf16.msra.mxu0 %v2087
    %2484 = vmatpush.bf16.msra.mxu0 %v2080
    %2485 = vmatpush.bf16.msra.mxu0 %v2073
    %2486 = vmatpush.bf16.msra.mxu0 %v2066
    %2487 = vmatmul.bf16.gmra.mxu0 %v975
    %v2488 = vpop.f32.mrf.mxu0
    %v2489 = vadd.f32 %v2476, %v2488
    %v2490 = vpop.f32.mrf.mxu0
    %2491 = vdwg.mxu0
    %2492 = vmatpush.bf16.msra.mxu0 %v2171
    %2493 = vmatpush.bf16.msra.mxu0 %v2164
    %2494 = vmatpush.bf16.msra.mxu0 %v2157
    %2495 = vmatpush.bf16.msra.mxu0 %v2150
    %2496 = vmatpush.bf16.msra.mxu0 %v2143
    %2497 = vmatpush.bf16.msra.mxu0 %v2136
    %2498 = vmatpush.bf16.msra.mxu0 %v2129
    %2499 = vmatpush.bf16.msra.mxu0 %v2122
    %2500 = vmatmul.bf16.gmra.mxu0 %v976
    %v2501 = vpop.f32.mrf.mxu0
    %v2502 = vadd.f32 %v2489, %v2501
    %v2503 = vpop.f32.mrf.mxu0
    %2504 = vdwg.mxu0
    %2505 = vmatpush.bf16.msra.mxu0 %v2004
    %2506 = vmatpush.bf16.msra.mxu0 %v1997
    %2507 = vmatpush.bf16.msra.mxu0 %v1990
    %2508 = vmatpush.bf16.msra.mxu0 %v1983
    %2509 = vmatpush.bf16.msra.mxu0 %v1976
    %2510 = vmatpush.bf16.msra.mxu0 %v1969
    %2511 = vmatpush.bf16.msra.mxu0 %v1962
    %2512 = vmatpush.bf16.msra.mxu0 %v1955
    %2513 = vmatmul.bf16.gmra.mxu0 %v973
    %v2514 = vpop.f32.mrf.mxu0
    %v2515 = vadd.f32 %v1237, %v2514
    %v2516 = vpop.f32.mrf.mxu0
    %2517 = vdwg.mxu0
    %2518 = vmatpush.bf16.msra.mxu0 %v2060
    %2519 = vmatpush.bf16.msra.mxu0 %v2053
    %2520 = vmatpush.bf16.msra.mxu0 %v2046
    %2521 = vmatpush.bf16.msra.mxu0 %v2039
    %2522 = vmatpush.bf16.msra.mxu0 %v2032
    %2523 = vmatpush.bf16.msra.mxu0 %v2025
    %2524 = vmatpush.bf16.msra.mxu0 %v2018
    %2525 = vmatpush.bf16.msra.mxu0 %v2011
    %2526 = vmatmul.bf16.gmra.mxu0 %v974
    %v2527 = vpop.f32.mrf.mxu0
    %v2528 = vadd.f32 %v2515, %v2527
    %v2529 = vpop.f32.mrf.mxu0
    %2530 = vdwg.mxu0
    %2531 = vmatpush.bf16.msra.mxu0 %v2116
    %2532 = vmatpush.bf16.msra.mxu0 %v2109
    %2533 = vmatpush.bf16.msra.mxu0 %v2102
    %2534 = vmatpush.bf16.msra.mxu0 %v2095
    %2535 = vmatpush.bf16.msra.mxu0 %v2088
    %2536 = vmatpush.bf16.msra.mxu0 %v2081
    %2537 = vmatpush.bf16.msra.mxu0 %v2074
    %2538 = vmatpush.bf16.msra.mxu0 %v2067
    %2539 = vmatmul.bf16.gmra.mxu0 %v975
    %v2540 = vpop.f32.mrf.mxu0
    %v2541 = vadd.f32 %v2528, %v2540
    %v2542 = vpop.f32.mrf.mxu0
    %2543 = vdwg.mxu0
    %2544 = vmatpush.bf16.msra.mxu0 %v2172
    %2545 = vmatpush.bf16.msra.mxu0 %v2165
    %2546 = vmatpush.bf16.msra.mxu0 %v2158
    %2547 = vmatpush.bf16.msra.mxu0 %v2151
    %2548 = vmatpush.bf16.msra.mxu0 %v2144
    %2549 = vmatpush.bf16.msra.mxu0 %v2137
    %2550 = vmatpush.bf16.msra.mxu0 %v2130
    %2551 = vmatpush.bf16.msra.mxu0 %v2123
    %2552 = vmatmul.bf16.gmra.mxu0 %v976
    %v2553 = vpop.f32.mrf.mxu0
    %v2554 = vadd.f32 %v2541, %v2553
    %v2555 = vpop.f32.mrf.mxu0
    %2556 = vdwg.mxu0
    %2557 = vmatpush.bf16.msra.mxu0 %v2005
    %2558 = vmatpush.bf16.msra.mxu0 %v1998
    %2559 = vmatpush.bf16.msra.mxu0 %v1991
    %2560 = vmatpush.bf16.msra.mxu0 %v1984
    %2561 = vmatpush.bf16.msra.mxu0 %v1977
    %2562 = vmatpush.bf16.msra.mxu0 %v1970
    %2563 = vmatpush.bf16.msra.mxu0 %v1963
    %2564 = vmatpush.bf16.msra.mxu0 %v1956
    %2565 = vmatmul.bf16.gmra.mxu0 %v973
    %v2566 = vpop.f32.mrf.mxu0
    %v2567 = vadd.f32 %v1238, %v2566
    %v2568 = vpop.f32.mrf.mxu0
    %2569 = vdwg.mxu0
    %2570 = vmatpush.bf16.msra.mxu0 %v2061
    %2571 = vmatpush.bf16.msra.mxu0 %v2054
    %2572 = vmatpush.bf16.msra.mxu0 %v2047
    %2573 = vmatpush.bf16.msra.mxu0 %v2040
    %2574 = vmatpush.bf16.msra.mxu0 %v2033
    %2575 = vmatpush.bf16.msra.mxu0 %v2026
    %2576 = vmatpush.bf16.msra.mxu0 %v2019
    %2577 = vmatpush.bf16.msra.mxu0 %v2012
    %2578 = vmatmul.bf16.gmra.mxu0 %v974
    %v2579 = vpop.f32.mrf.mxu0
    %v2580 = vadd.f32 %v2567, %v2579
    %v2581 = vpop.f32.mrf.mxu0
    %2582 = vdwg.mxu0
    %2583 = vmatpush.bf16.msra.mxu0 %v2117
    %2584 = vmatpush.bf16.msra.mxu0 %v2110
    %2585 = vmatpush.bf16.msra.mxu0 %v2103
    %2586 = vmatpush.bf16.msra.mxu0 %v2096
    %2587 = vmatpush.bf16.msra.mxu0 %v2089
    %2588 = vmatpush.bf16.msra.mxu0 %v2082
    %2589 = vmatpush.bf16.msra.mxu0 %v2075
    %2590 = vmatpush.bf16.msra.mxu0 %v2068
    %2591 = vmatmul.bf16.gmra.mxu0 %v975
    %v2592 = vpop.f32.mrf.mxu0
    %v2593 = vadd.f32 %v2580, %v2592
    %v2594 = vpop.f32.mrf.mxu0
    %2595 = vdwg.mxu0
    %2596 = vmatpush.bf16.msra.mxu0 %v2173
    %2597 = vmatpush.bf16.msra.mxu0 %v2166
    %2598 = vmatpush.bf16.msra.mxu0 %v2159
    %2599 = vmatpush.bf16.msra.mxu0 %v2152
    %2600 = vmatpush.bf16.msra.mxu0 %v2145
    %2601 = vmatpush.bf16.msra.mxu0 %v2138
    %2602 = vmatpush.bf16.msra.mxu0 %v2131
    %2603 = vmatpush.bf16.msra.mxu0 %v2124
    %2604 = vmatmul.bf16.gmra.mxu0 %v976
    %v2605 = vpop.f32.mrf.mxu0
    %v2606 = vadd.f32 %v2593, %v2605
    %v2607 = vpop.f32.mrf.mxu0
    %2608 = vdwg.mxu0
    %2609 = vmatpush.bf16.msra.mxu0 %v2006
    %2610 = vmatpush.bf16.msra.mxu0 %v1999
    %2611 = vmatpush.bf16.msra.mxu0 %v1992
    %2612 = vmatpush.bf16.msra.mxu0 %v1985
    %2613 = vmatpush.bf16.msra.mxu0 %v1978
    %2614 = vmatpush.bf16.msra.mxu0 %v1971
    %2615 = vmatpush.bf16.msra.mxu0 %v1964
    %2616 = vmatpush.bf16.msra.mxu0 %v1957
    %2617 = vmatmul.bf16.gmra.mxu0 %v973
    %v2618 = vpop.f32.mrf.mxu0
    %v2619 = vadd.f32 %v1239, %v2618
    %v2620 = vpop.f32.mrf.mxu0
    %2621 = vdwg.mxu0
    %2622 = vmatpush.bf16.msra.mxu0 %v2062
    %2623 = vmatpush.bf16.msra.mxu0 %v2055
    %2624 = vmatpush.bf16.msra.mxu0 %v2048
    %2625 = vmatpush.bf16.msra.mxu0 %v2041
    %2626 = vmatpush.bf16.msra.mxu0 %v2034
    %2627 = vmatpush.bf16.msra.mxu0 %v2027
    %2628 = vmatpush.bf16.msra.mxu0 %v2020
    %2629 = vmatpush.bf16.msra.mxu0 %v2013
    %2630 = vmatmul.bf16.gmra.mxu0 %v974
    %v2631 = vpop.f32.mrf.mxu0
    %v2632 = vadd.f32 %v2619, %v2631
    %v2633 = vpop.f32.mrf.mxu0
    %2634 = vdwg.mxu0
    %2635 = vmatpush.bf16.msra.mxu0 %v2118
    %2636 = vmatpush.bf16.msra.mxu0 %v2111
    %2637 = vmatpush.bf16.msra.mxu0 %v2104
    %2638 = vmatpush.bf16.msra.mxu0 %v2097
    %2639 = vmatpush.bf16.msra.mxu0 %v2090
    %2640 = vmatpush.bf16.msra.mxu0 %v2083
    %2641 = vmatpush.bf16.msra.mxu0 %v2076
    %2642 = vmatpush.bf16.msra.mxu0 %v2069
    %2643 = vmatmul.bf16.gmra.mxu0 %v975
    %v2644 = vpop.f32.mrf.mxu0
    %v2645 = vadd.f32 %v2632, %v2644
    %v2646 = vpop.f32.mrf.mxu0
    %2647 = vdwg.mxu0
    %2648 = vmatpush.bf16.msra.mxu0 %v2174
    %2649 = vmatpush.bf16.msra.mxu0 %v2167
    %2650 = vmatpush.bf16.msra.mxu0 %v2160
    %2651 = vmatpush.bf16.msra.mxu0 %v2153
    %2652 = vmatpush.bf16.msra.mxu0 %v2146
    %2653 = vmatpush.bf16.msra.mxu0 %v2139
    %2654 = vmatpush.bf16.msra.mxu0 %v2132
    %2655 = vmatpush.bf16.msra.mxu0 %v2125
    %2656 = vmatmul.bf16.gmra.mxu0 %v976
    %v2657 = vpop.f32.mrf.mxu0
    %v2658 = vadd.f32 %v2645, %v2657
    %v2659 = vpop.f32.mrf.mxu0
    %2660 = vdwg.mxu0
    %2661 = vmatpush.bf16.msra.mxu0 %v2007
    %2662 = vmatpush.bf16.msra.mxu0 %v2000
    %2663 = vmatpush.bf16.msra.mxu0 %v1993
    %2664 = vmatpush.bf16.msra.mxu0 %v1986
    %2665 = vmatpush.bf16.msra.mxu0 %v1979
    %2666 = vmatpush.bf16.msra.mxu0 %v1972
    %2667 = vmatpush.bf16.msra.mxu0 %v1965
    %2668 = vmatpush.bf16.msra.mxu0 %v1958
    %2669 = vmatmul.bf16.gmra.mxu0 %v973
    %v2670 = vpop.f32.mrf.mxu0
    %v2671 = vadd.f32 %v1240, %v2670
    %v2672 = vpop.f32.mrf.mxu0
    %2673 = vdwg.mxu0
    %2674 = vmatpush.bf16.msra.mxu0 %v2063
    %2675 = vmatpush.bf16.msra.mxu0 %v2056
    %2676 = vmatpush.bf16.msra.mxu0 %v2049
    %2677 = vmatpush.bf16.msra.mxu0 %v2042
    %2678 = vmatpush.bf16.msra.mxu0 %v2035
    %2679 = vmatpush.bf16.msra.mxu0 %v2028
    %2680 = vmatpush.bf16.msra.mxu0 %v2021
    %2681 = vmatpush.bf16.msra.mxu0 %v2014
    %2682 = vmatmul.bf16.gmra.mxu0 %v974
    %v2683 = vpop.f32.mrf.mxu0
    %v2684 = vadd.f32 %v2671, %v2683
    %v2685 = vpop.f32.mrf.mxu0
    %2686 = vdwg.mxu0
    %2687 = vmatpush.bf16.msra.mxu0 %v2119
    %2688 = vmatpush.bf16.msra.mxu0 %v2112
    %2689 = vmatpush.bf16.msra.mxu0 %v2105
    %2690 = vmatpush.bf16.msra.mxu0 %v2098
    %2691 = vmatpush.bf16.msra.mxu0 %v2091
    %2692 = vmatpush.bf16.msra.mxu0 %v2084
    %2693 = vmatpush.bf16.msra.mxu0 %v2077
    %2694 = vmatpush.bf16.msra.mxu0 %v2070
    %2695 = vmatmul.bf16.gmra.mxu0 %v975
    %v2696 = vpop.f32.mrf.mxu0
    %v2697 = vadd.f32 %v2684, %v2696
    %v2698 = vpop.f32.mrf.mxu0
    %2699 = vdwg.mxu0
    %2700 = vmatpush.bf16.msra.mxu0 %v2175
    %2701 = vmatpush.bf16.msra.mxu0 %v2168
    %2702 = vmatpush.bf16.msra.mxu0 %v2161
    %2703 = vmatpush.bf16.msra.mxu0 %v2154
    %2704 = vmatpush.bf16.msra.mxu0 %v2147
    %2705 = vmatpush.bf16.msra.mxu0 %v2140
    %2706 = vmatpush.bf16.msra.mxu0 %v2133
    %2707 = vmatpush.bf16.msra.mxu0 %v2126
    %2708 = vmatmul.bf16.gmra.mxu0 %v976
    %v2709 = vpop.f32.mrf.mxu0
    %v2710 = vadd.f32 %v2697, %v2709
    %v2711 = vpop.f32.mrf.mxu0
    %2712 = vdwg.mxu0
    %2713 = vmatpush.bf16.msra.mxu0 %v2008
    %2714 = vmatpush.bf16.msra.mxu0 %v2001
    %2715 = vmatpush.bf16.msra.mxu0 %v1994
    %2716 = vmatpush.bf16.msra.mxu0 %v1987
    %2717 = vmatpush.bf16.msra.mxu0 %v1980
    %2718 = vmatpush.bf16.msra.mxu0 %v1973
    %2719 = vmatpush.bf16.msra.mxu0 %v1966
    %2720 = vmatpush.bf16.msra.mxu0 %v1959
    %2721 = vmatmul.bf16.gmra.mxu0 %v973
    %v2722 = vpop.f32.mrf.mxu0
    %v2723 = vadd.f32 %v1241, %v2722
    %v2724 = vpop.f32.mrf.mxu0
    %2725 = vdwg.mxu0
    %2726 = vmatpush.bf16.msra.mxu0 %v2064
    %2727 = vmatpush.bf16.msra.mxu0 %v2057
    %2728 = vmatpush.bf16.msra.mxu0 %v2050
    %2729 = vmatpush.bf16.msra.mxu0 %v2043
    %2730 = vmatpush.bf16.msra.mxu0 %v2036
    %2731 = vmatpush.bf16.msra.mxu0 %v2029
    %2732 = vmatpush.bf16.msra.mxu0 %v2022
    %2733 = vmatpush.bf16.msra.mxu0 %v2015
    %2734 = vmatmul.bf16.gmra.mxu0 %v974
    %v2735 = vpop.f32.mrf.mxu0
    %v2736 = vadd.f32 %v2723, %v2735
    %v2737 = vpop.f32.mrf.mxu0
    %2738 = vdwg.mxu0
    %2739 = vmatpush.bf16.msra.mxu0 %v2120
    %2740 = vmatpush.bf16.msra.mxu0 %v2113
    %2741 = vmatpush.bf16.msra.mxu0 %v2106
    %2742 = vmatpush.bf16.msra.mxu0 %v2099
    %2743 = vmatpush.bf16.msra.mxu0 %v2092
    %2744 = vmatpush.bf16.msra.mxu0 %v2085
    %2745 = vmatpush.bf16.msra.mxu0 %v2078
    %2746 = vmatpush.bf16.msra.mxu0 %v2071
    %2747 = vmatmul.bf16.gmra.mxu0 %v975
    %v2748 = vpop.f32.mrf.mxu0
    %v2749 = vadd.f32 %v2736, %v2748
    %v2750 = vpop.f32.mrf.mxu0
    %2751 = vdwg.mxu0
    %2752 = vmatpush.bf16.msra.mxu0 %v2176
    %2753 = vmatpush.bf16.msra.mxu0 %v2169
    %2754 = vmatpush.bf16.msra.mxu0 %v2162
    %2755 = vmatpush.bf16.msra.mxu0 %v2155
    %2756 = vmatpush.bf16.msra.mxu0 %v2148
    %2757 = vmatpush.bf16.msra.mxu0 %v2141
    %2758 = vmatpush.bf16.msra.mxu0 %v2134
    %2759 = vmatpush.bf16.msra.mxu0 %v2127
    %2760 = vmatmul.bf16.gmra.mxu0 %v976
    %v2761 = vpop.f32.mrf.mxu0
    %v2762 = vadd.f32 %v2749, %v2761
    %v2763 = vpop.f32.mrf.mxu0
    %2764 = vdwg.mxu0
    %v2765 = vsub.f32 0.0, %v2450
    %v2766 = vsub.f32 0.0, %v2502
    %v2767 = vsub.f32 0.0, %v2554
    %v2768 = vsub.f32 0.0, %v2606
    %v2769 = vsub.f32 0.0, %v2658
    %v2770 = vsub.f32 0.0, %v2710
    %v2771 = vsub.f32 0.0, %v2762
    %v2772 = vmul.f32 %v2765, 1.442695
    %v2773 = vpow.pop %v2772
    %v2774 = vmul.f32 %v2766, 1.442695
    %v2775 = vpow.pop %v2774
    %v2776 = vmul.f32 %v2767, 1.442695
    %v2777 = vpow.pop %v2776
    %v2778 = vmul.f32 %v2768, 1.442695
    %v2779 = vpow.pop %v2778
    %v2780 = vmul.f32 %v2769, 1.442695
    %v2781 = vpow.pop %v2780
    %v2782 = vmul.f32 %v2770, 1.442695
    %v2783 = vpow.pop %v2782
    %v2784 = vmul.f32 %v2771, 1.442695
    %v2785 = vpow.pop %v2784
    %v2786 = vadd.f32 %v2773, 1.0
    %v2787 = vadd.f32 %v2775, 1.0
    %v2788 = vadd.f32 %v2777, 1.0
    %v2789 = vadd.f32 %v2779, 1.0
    %v2790 = vadd.f32 %v2781, 1.0
    %v2791 = vadd.f32 %v2783, 1.0
    %v2792 = vadd.f32 %v2785, 1.0
    %v2793 = vrcp.pop %v2786
    %v2794 = vrcp.pop %v2787
    %v2795 = vrcp.pop %v2788
    %v2796 = vrcp.pop %v2789
    %v2797 = vrcp.pop %v2790
    %v2798 = vrcp.pop %v2791
    %v2799 = vrcp.pop %v2792
    %2800 = vst [vmem:[#allocation17] sm:$0xff] %v2793
    %2801 = vst [vmem:[#allocation17 + $0x8] sm:$0xff] %v2794
    %2802 = vst [vmem:[#allocation17 + $0x10] sm:$0xff] %v2795
    %2803 = vst [vmem:[#allocation17 + $0x18] sm:$0xff] %v2796
    %2804 = vst [vmem:[#allocation17 + $0x20] sm:$0xff] %v2797
    %2805 = vst [vmem:[#allocation17 + $0x28] sm:$0xff] %v2798
    %2806 = vst [vmem:[#allocation17 + $0x30] sm:$0xff] %v2799
    // Predicated region
    $region82: #{tpu_custom_call.1} parent=1 // pred_check
      _
    $region83: #{tpu_custom_call.1} parent=1 // pred_check_branch
      %2808 = sbr.rel (0) target = $region85
    $region84: #{tpu_custom_call.1} parent=1 // pred_region
      %2810 = vsyncadd [#allocation4], 0
      %s2812 = sshll.u32 [#allocation17], 4
      %s2813 = int_to_ptr.vmem [resolvable:$true] %s2812
      %s2814 = sshll.u32 %s11, 4
      %s2815 = int_to_ptr.hbm [resolvable:$true] %s2814
      %2817 = dma.vmem_to_hbm [thread:$0]  %s2813, 896, %s2815, [#allocation4]
    $region85: #{tpu_custom_call.1} parent=1 // pred_fallthru
      _
    // Predicated region
    $region86: #{tpu_custom_call.1} parent=1 // pred_check
      _
    $region87: #{tpu_custom_call.1} parent=1 // pred_check_branch
      %2819 = sbr.rel (0) target = $region89
    $region88: #{tpu_custom_call.1} parent=1 // pred_region
      %2821 = dma.done [#allocation4], 896
    $region89: #{tpu_custom_call.1} parent=1 // pred_fallthru
      _
    %2822 = vsyncpa [#allocation3], 1
    %2823 = vsyncpa [#allocation6], 1
    %2824 = vsyncpa [#allocation9], 1
    %2825 = vsyncpa [#allocation12], 1
    %2826 = vsyncpa [#allocation15], 1
    %2827 = vsyncpa [#allocation4], 1

</llo_original>
